<compile_context>
chip_gen: v7x
topology: tpu7x:2x2x1
jax: 0.10.0
libtpu: 0.0.40
codegen_flags: <defaults>
</compile_context>

<pallas_src>
import jax
import jax.numpy as jnp
from jax.experimental import pallas as pl
from jax.experimental.pallas import tpu as pltpu

EPS = 1e-4
LANE = 128
# Scoped-VMEM limit: above the 16/32 MiB per-chip defaults, below v7x's 64 MiB physical cap.
VMEM_LIMIT = 48 * 1024 * 1024
# Per-grid-step working-set budget (incl. double buffering) used to choose the row-tile height.
TILE_BUDGET = 20 * 1024 * 1024


def _conv_stats_kernel(x_ref, w_ref, conv_ref, stats_ref):
    """3x3 conv for one (row-tile, cout-tile) block + BN sum / sum-of-squares partials.

    x_ref    : (1, TH+2, W+2, Cin)   bf16, zero-padded rows incl. 1-pixel halo
    w_ref    : (9*Cin, TCout)        bf16, tap-major [(dy*3+dx)*Cin + c]
    conv_ref : (1, TH, W, TCout)     f32 conv output tile
    stats_ref: (1, 2, TCout)         f32 [sum, sum_of_squares] over this tile
    """
    _, thp2, wp2, cin = x_ref.shape
    th, w = thp2 - 2, wp2 - 2
    tcout = conv_ref.shape[-1]

    # im2col: 9 shifted windows concatenated along channels -> single deep-K MXU matmul
    # (K = 9*Cin instead of nine K=Cin matmuls, one accumulate pass instead of nine).
    window = jnp.concatenate(
        [x_ref[:, dy:dy + th, dx:dx + w, :] for dy in range(3) for dx in range(3)],
        axis=-1)                                              # (1, TH, W, 9*Cin) bf16
    lhs = window.reshape(th * w, 9 * cin)
    acc = jnp.dot(lhs, w_ref[...], preferred_element_type=jnp.float32)   # (TH*W, TCout) f32

    conv_ref[...] = acc.reshape(1, th, w, tcout)
    stats_ref[...] = jnp.concatenate(
        [jnp.sum(acc, axis=0, keepdims=True),
         jnp.sum(acc * acc, axis=0, keepdims=True)], axis=0).reshape(1, 2, tcout)


def _bn_relu_kernel(conv_ref, scale_ref, shift_ref, out_ref):
    """Apply folded batch-norm (y = conv*scale + shift) and ReLU, per tile."""
    y = conv_ref[...] * scale_ref[...] + shift_ref[...]
    out_ref[...] = jnp.maximum(y, 0.0).astype(out_ref.dtype)


def _choose_row_tile(H, W, Cin, tcout):
    """Largest divisor of H whose per-step (double-buffered) footprint fits the budget."""
    for th in [d for d in range(H, 0, -1) if H % d == 0]:
        per_step = 2 * ((th + 2) * (W + 2) * Cin * 2      # bf16 input tile
                        + 2 * th * W * tcout * 4          # f32 conv / output tiles
                        + 9 * Cin * tcout * 2             # bf16 weight tile
                        + 4 * tcout * 4)                  # stats / scale / shift
        if per_step <= TILE_BUDGET:
            return th
    return 1


def conv_block_forward(x_nchw, weight, bias, gamma, beta):
    """x_nchw: (N, Cin, H, W); weight: (Cout, Cin, 3, 3); bias/gamma/beta: (Cout,)."""
    del bias  # cancelled exactly by BatchNorm's batch-mean subtraction (see header note)
    N, Cin, H, W = x_nchw.shape
    Cout = weight.shape[0]
    Cpad = ((Cout + LANE - 1) // LANE) * LANE
    tcout = 256 if Cpad % 256 == 0 else 128               # 256-deep Cout tiles on v6e/v7x
    TH = _choose_row_tile(H, W, Cin, tcout)
    num_h = H // TH
    R = N * num_h
    n_cout = Cpad // tcout

    # TODO(synk): in an end-to-end NHWC model, drop this transpose/pad and handle the
    # 1-pixel halo with overlapping-row DMA inside the kernel instead of padding in HBM.
    x_nhwc = jnp.transpose(x_nchw, (0, 2, 3, 1)).astype(jnp.bfloat16)
    x_pad = jnp.pad(x_nhwc, ((0, 0), (1, 1), (1, 1), (0, 0)))
    if num_h == 1:
        x_tiles = x_pad                                    # (N, H+2, W+2, Cin)
    else:
        row_idx = (jnp.arange(num_h) * TH)[:, None] + jnp.arange(TH + 2)[None, :]
        x_tiles = x_pad[:, row_idx].reshape(R, TH + 2, W + 2, Cin)

    # (Cout, Cin, 3, 3) -> (3, 3, Cin, Cout) -> (9*Cin, Cpad), tap index = dy*3+dx, bf16.
    w9 = jnp.transpose(weight, (2, 3, 1, 0)).reshape(9 * Cin, Cout)
    w_packed = jnp.pad(w9, ((0, 0), (0, Cpad - Cout))).astype(jnp.bfloat16)

    cparams = pltpu.CompilerParams(
        dimension_semantics=("parallel", "parallel"),
        vmem_limit_bytes=VMEM_LIMIT)

    # ---- pass 1: conv + BN partial stats --------------------------------------------------
    conv_out, stats = pl.pallas_call(
        _conv_stats_kernel,
        grid=(R, n_cout),
        in_specs=[
            pl.BlockSpec((1, TH + 2, W + 2, Cin), lambda r, j: (r, 0, 0, 0)),
            pl.BlockSpec((9 * Cin, tcout), lambda r, j: (0, j)),
        ],
        out_specs=(
            pl.BlockSpec((1, TH, W, tcout), lambda r, j: (r, 0, 0, j)),
            pl.BlockSpec((1, 2, tcout), lambda r, j: (r, 0, j)),
        ),
        out_shape=(
            jax.ShapeDtypeStruct((R, TH, W, Cpad), jnp.float32),
            jax.ShapeDtypeStruct((R, 2, Cpad), jnp.float32),
        ),
        compiler_params=cparams,
    )(x_tiles, w_packed)

    # Fold batch statistics + affine params into per-channel scale/shift (tiny glue).
    count = float(N * H * W)
    sum_c = jnp.sum(stats[:, 0, :], axis=0)
    sumsq = jnp.sum(stats[:, 1, :], axis=0)
    mean = sum_c / count
    var = jnp.maximum(sumsq / count - mean * mean, 0.0)    # biased variance, clamp >= 0
    rstd = jax.lax.rsqrt(var + EPS)
    gamma_p = jnp.pad(gamma.astype(jnp.float32), (0, Cpad - Cout))
    beta_p = jnp.pad(beta.astype(jnp.float32), (0, Cpad - Cout))
    scale = (gamma_p * rstd).reshape(1, Cpad)
    shift = (beta_p - mean * gamma_p * rstd).reshape(1, Cpad)

    # ---- pass 2: normalize + ReLU ---------------------------------------------------------
    out_pad = pl.pallas_call(
        _bn_relu_kernel,
        grid=(R, n_cout),
        in_specs=[
            pl.BlockSpec((1, TH, W, tcout), lambda r, j: (r, 0, 0, j)),
            pl.BlockSpec((1, tcout), lambda r, j: (0, j)),
            pl.BlockSpec((1, tcout), lambda r, j: (0, j)),
        ],
        out_specs=pl.BlockSpec((1, TH, W, tcout), lambda r, j: (r, 0, 0, j)),
        out_shape=jax.ShapeDtypeStruct((R, TH, W, Cpad), jnp.float32),
        compiler_params=cparams,
    )(conv_out, scale, shift)

    out_nhwc = out_pad.reshape(N, H, W, Cpad)[..., :Cout]
    return jnp.transpose(out_nhwc, (0, 3, 1, 2))


def _reference_forward(x_nchw, weight, bias, gamma, beta):
    """Pure-JAX reference: Conv2d (bf16 inputs, f32 accum) + BatchNorm2d(train) + ReLU."""
    conv = jax.lax.conv_general_dilated(
        x_nchw.astype(jnp.bfloat16), weight.astype(jnp.bfloat16),
        window_strides=(1, 1), padding=((1, 1), (1, 1)),
        dimension_numbers=("NCHW", "OIHW", "NCHW"),
        preferred_element_type=jnp.float32)
    conv = conv + bias.reshape(1, -1, 1, 1)
    mean = jnp.mean(conv, axis=(0, 2, 3), keepdims=True)
    var = jnp.mean((conv - mean) ** 2, axis=(0, 2, 3), keepdims=True)
    y = (conv - mean) * jax.lax.rsqrt(var + EPS)
    y = y * gamma.reshape(1, -1, 1, 1) + beta.reshape(1, -1, 1, 1)
    return jnp.maximum(y, 0.0)


if __name__ == "__main__":
    key = jax.random.PRNGKey(0)
    k_x, k_w, k_b = jax.random.split(key, 3)

    N, Cin, Cout, H, W = 2, 4, 8, 16, 16

    x = jax.random.normal(k_x, (N, Cin, H, W), dtype=jnp.float32)

    # Deterministic PyTorch-like init (BN affine init: gamma=1, beta=0).
    fan_in = Cin * 3 * 3
    bound = 1.0 / (fan_in ** 0.5)
    weight = jax.random.uniform(k_w, (Cout, Cin, 3, 3), jnp.float32, -bound, bound)
    bias = jax.random.uniform(k_b, (Cout,), jnp.float32, -bound, bound)
    gamma = jnp.ones((Cout,), jnp.float32)
    beta = jnp.zeros((Cout,), jnp.float32)

    fwd = jax.jit(conv_block_forward)
    out = jax.block_until_ready(fwd(x, weight, bias, gamma, beta))

    ref = _reference_forward(x, weight, bias, gamma, beta)
    assert out.shape == (N, Cout, H, W)
    assert jnp.allclose(out, ref, atol=2e-3, rtol=2e-3), "mismatch vs reference"

    print("KERNEL_OK")
</pallas_src>

<mosaic_0001>
module attributes {stable_mosaic.version = 11 : i64} {
  func.func @_conv_stats_kernel(%arg0: i32, %arg1: i32, %arg2: memref<1x18x18x4xbf16, #tpu.memory_space<vmem>>, %arg3: memref<36x128xbf16, #tpu.memory_space<vmem>>, %arg4: memref<1x16x16x128xf32, #tpu.memory_space<vmem>>, %arg5: memref<1x2x128xf32, #tpu.memory_space<vmem>>) attributes {dimension_semantics = [#tpu.dimension_semantics<parallel>, #tpu.dimension_semantics<parallel>], iteration_bounds = array<i64: 2, 1>, scalar_prefetch = 0 : i64, scratch_operands = 0 : i64, tpu.core_type = #tpu.core_type<tc>, window_params = [{transform_indices = @transform_0, window_bounds = array<i64: 1, 18, 18, 4>}, {transform_indices = @transform_1, window_bounds = array<i64: 36, 128>}, {transform_indices = @transform_2, window_bounds = array<i64: 1, 16, 16, 128>}, {transform_indices = @transform_3, window_bounds = array<i64: 1, 2, 128>}]} {
    %c0 = arith.constant 0 : index
    %c0_0 = arith.constant 0 : index
    %c0_1 = arith.constant 0 : index
    %c0_2 = arith.constant 0 : index
    %0 = vector.load %arg2[%c0, %c0_0, %c0_1, %c0_2] : memref<1x18x18x4xbf16, #tpu.memory_space<vmem>>, vector<1x16x16x4xbf16>
    %c0_3 = arith.constant 0 : index
    %c0_4 = arith.constant 0 : index
    %c1 = arith.constant 1 : index
    %c0_5 = arith.constant 0 : index
    %1 = vector.load %arg2[%c0_3, %c0_4, %c1, %c0_5] : memref<1x18x18x4xbf16, #tpu.memory_space<vmem>>, vector<1x16x16x4xbf16>
    %c0_6 = arith.constant 0 : index
    %c0_7 = arith.constant 0 : index
    %c2 = arith.constant 2 : index
    %c0_8 = arith.constant 0 : index
    %2 = vector.load %arg2[%c0_6, %c0_7, %c2, %c0_8] : memref<1x18x18x4xbf16, #tpu.memory_space<vmem>>, vector<1x16x16x4xbf16>
    %c0_9 = arith.constant 0 : index
    %c1_10 = arith.constant 1 : index
    %c0_11 = arith.constant 0 : index
    %c0_12 = arith.constant 0 : index
    %3 = vector.load %arg2[%c0_9, %c1_10, %c0_11, %c0_12] : memref<1x18x18x4xbf16, #tpu.memory_space<vmem>>, vector<1x16x16x4xbf16>
    %c0_13 = arith.constant 0 : index
    %c1_14 = arith.constant 1 : index
    %c1_15 = arith.constant 1 : index
    %c0_16 = arith.constant 0 : index
    %4 = vector.load %arg2[%c0_13, %c1_14, %c1_15, %c0_16] : memref<1x18x18x4xbf16, #tpu.memory_space<vmem>>, vector<1x16x16x4xbf16>
    %c0_17 = arith.constant 0 : index
    %c1_18 = arith.constant 1 : index
    %c2_19 = arith.constant 2 : index
    %c0_20 = arith.constant 0 : index
    %5 = vector.load %arg2[%c0_17, %c1_18, %c2_19, %c0_20] : memref<1x18x18x4xbf16, #tpu.memory_space<vmem>>, vector<1x16x16x4xbf16>
    %c0_21 = arith.constant 0 : index
    %c2_22 = arith.constant 2 : index
    %c0_23 = arith.constant 0 : index
    %c0_24 = arith.constant 0 : index
    %6 = vector.load %arg2[%c0_21, %c2_22, %c0_23, %c0_24] : memref<1x18x18x4xbf16, #tpu.memory_space<vmem>>, vector<1x16x16x4xbf16>
    %c0_25 = arith.constant 0 : index
    %c2_26 = arith.constant 2 : index
    %c1_27 = arith.constant 1 : index
    %c0_28 = arith.constant 0 : index
    %7 = vector.load %arg2[%c0_25, %c2_26, %c1_27, %c0_28] : memref<1x18x18x4xbf16, #tpu.memory_space<vmem>>, vector<1x16x16x4xbf16>
    %c0_29 = arith.constant 0 : index
    %c2_30 = arith.constant 2 : index
    %c2_31 = arith.constant 2 : index
    %c0_32 = arith.constant 0 : index
    %8 = vector.load %arg2[%c0_29, %c2_30, %c2_31, %c0_32] : memref<1x18x18x4xbf16, #tpu.memory_space<vmem>>, vector<1x16x16x4xbf16>
    %9 = tpu.concatenate %0, %1, %2, %3, %4, %5, %6, %7, %8 in 3 : vector<1x16x16x4xbf16>, vector<1x16x16x4xbf16>, vector<1x16x16x4xbf16>, vector<1x16x16x4xbf16>, vector<1x16x16x4xbf16>, vector<1x16x16x4xbf16>, vector<1x16x16x4xbf16>, vector<1x16x16x4xbf16>, vector<1x16x16x4xbf16> -> vector<1x16x16x36xbf16>
    %10 = vector.shape_cast %9 : vector<1x16x16x36xbf16> to vector<256x36xbf16>
    %c0_33 = arith.constant 0 : index
    %c0_34 = arith.constant 0 : index
    %11 = vector.load %arg3[%c0_33, %c0_34] : memref<36x128xbf16, #tpu.memory_space<vmem>>, vector<36x128xbf16>
    %cst = arith.constant dense<0.000000e+00> : vector<256x128xf32>
    %12 = tpu.matmul %10, %11, %cst {dimension_numbers = #tpu.dot_dimension_numbers<[1], [0], [0], [1], [0, 0, 1, 1], [], []>} : vector<256x36xbf16>, vector<36x128xbf16>, vector<256x128xf32> -> vector<256x128xf32>
    %13 = vector.shape_cast %12 : vector<256x128xf32> to vector<1x16x16x128xf32>
    %c0_35 = arith.constant 0 : index
    %c0_36 = arith.constant 0 : index
    %c0_37 = arith.constant 0 : index
    %c0_38 = arith.constant 0 : index
    %14 = vector.load %arg4[%c0_35, %c0_36, %c0_37, %c0_38] : memref<1x16x16x128xf32, #tpu.memory_space<vmem>>, vector<1x16x16x128xf32>
    tpu.vector_store %arg4[%c0_35, %c0_36, %c0_37, %c0_38], %13 {strides = array<i32>} : memref<1x16x16x128xf32, #tpu.memory_space<vmem>>, vector<1x16x16x128xf32>,
    %cst_39 = arith.constant dense<0.000000e+00> : vector<128xf32>
    %15 = vector.multi_reduction <add>, %12, %cst_39 [0] : vector<256x128xf32> to vector<128xf32>
    %16 = vector.shape_cast %15 : vector<128xf32> to vector<1x128xf32>
    %17 = arith.mulf %12, %12 : vector<256x128xf32>
    %cst_40 = arith.constant dense<0.000000e+00> : vector<128xf32>
    %18 = vector.multi_reduction <add>, %17, %cst_40 [0] : vector<256x128xf32> to vector<128xf32>
    %19 = vector.shape_cast %18 : vector<128xf32> to vector<1x128xf32>
    %20 = tpu.concatenate %16, %19 in 0 : vector<1x128xf32>, vector<1x128xf32> -> vector<2x128xf32>
    %21 = vector.shape_cast %20 : vector<2x128xf32> to vector<1x2x128xf32>
    %c0_41 = arith.constant 0 : index
    %c0_42 = arith.constant 0 : index
    %c0_43 = arith.constant 0 : index
    %22 = vector.load %arg5[%c0_41, %c0_42, %c0_43] : memref<1x2x128xf32, #tpu.memory_space<vmem>>, vector<1x2x128xf32>
    tpu.vector_store %arg5[%c0_41, %c0_42, %c0_43], %21 {strides = array<i32>} : memref<1x2x128xf32, #tpu.memory_space<vmem>>, vector<1x2x128xf32>,
    return
  }
  func.func @transform_0(%arg0: i32, %arg1: i32) -> (i32, i32, i32, i32) {
    %c0_i32 = arith.constant 0 : i32
    %c0_i32_0 = arith.constant 0 : i32
    %c0_i32_1 = arith.constant 0 : i32
    %c0_i32_2 = arith.constant 0 : i32
    return %arg0, %c0_i32, %c0_i32_0, %c0_i32_1 : i32, i32, i32, i32
  }
  func.func @transform_1(%arg0: i32, %arg1: i32) -> (i32, i32) {
    %c0_i32 = arith.constant 0 : i32
    %c0_i32_0 = arith.constant 0 : i32
    return %c0_i32, %arg1 : i32, i32
  }
  func.func @transform_2(%arg0: i32, %arg1: i32) -> (i32, i32, i32, i32) {
    %c0_i32 = arith.constant 0 : i32
    %c0_i32_0 = arith.constant 0 : i32
    %c0_i32_1 = arith.constant 0 : i32
    return %arg0, %c0_i32, %c0_i32_0, %arg1 : i32, i32, i32, i32
  }
  func.func @transform_3(%arg0: i32, %arg1: i32) -> (i32, i32, i32) {
    %c0_i32 = arith.constant 0 : i32
    %c0_i32_0 = arith.constant 0 : i32
    return %arg0, %c0_i32, %arg1 : i32, i32, i32
  }
}

module attributes {stable_mosaic.version = 11 : i64} {
  func.func @_bn_relu_kernel(%arg0: i32, %arg1: i32, %arg2: memref<1x16x16x128xf32, #tpu.memory_space<vmem>>, %arg3: memref<1x128xf32, #tpu.memory_space<vmem>>, %arg4: memref<1x128xf32, #tpu.memory_space<vmem>>, %arg5: memref<1x16x16x128xf32, #tpu.memory_space<vmem>>) attributes {dimension_semantics = [#tpu.dimension_semantics<parallel>, #tpu.dimension_semantics<parallel>], iteration_bounds = array<i64: 2, 1>, scalar_prefetch = 0 : i64, scratch_operands = 0 : i64, tpu.core_type = #tpu.core_type<tc>, window_params = [{transform_indices = @transform_0, window_bounds = array<i64: 1, 16, 16, 128>}, {transform_indices = @transform_1, window_bounds = array<i64: 1, 128>}, {transform_indices = @transform_2, window_bounds = array<i64: 1, 128>}, {transform_indices = @transform_3, window_bounds = array<i64: 1, 16, 16, 128>}]} {
    %c0 = arith.constant 0 : index
    %c0_0 = arith.constant 0 : index
    %c0_1 = arith.constant 0 : index
    %c0_2 = arith.constant 0 : index
    %0 = vector.load %arg2[%c0, %c0_0, %c0_1, %c0_2] : memref<1x16x16x128xf32, #tpu.memory_space<vmem>>, vector<1x16x16x128xf32>
    %c0_3 = arith.constant 0 : index
    %c0_4 = arith.constant 0 : index
    %1 = vector.load %arg3[%c0_3, %c0_4] : memref<1x128xf32, #tpu.memory_space<vmem>>, vector<1x128xf32>
    %2 = vector.shape_cast %1 : vector<1x128xf32> to vector<1x1x1x128xf32>
    %3 = vector.broadcast %2 : vector<1x1x1x128xf32> to vector<1x16x16x128xf32>
    %4 = arith.mulf %0, %3 : vector<1x16x16x128xf32>
    %c0_5 = arith.constant 0 : index
    %c0_6 = arith.constant 0 : index
    %5 = vector.load %arg4[%c0_5, %c0_6] : memref<1x128xf32, #tpu.memory_space<vmem>>, vector<1x128xf32>
    %6 = vector.shape_cast %5 : vector<1x128xf32> to vector<1x1x1x128xf32>
    %7 = vector.broadcast %6 : vector<1x1x1x128xf32> to vector<1x16x16x128xf32>
    %8 = arith.addf %4, %7 : vector<1x16x16x128xf32>
    %cst = arith.constant 0.000000e+00 : f32
    %9 = vector.broadcast %cst : f32 to vector<1x16x16x128xf32>
    %10 = arith.maximumf %8, %9 : vector<1x16x16x128xf32>
    %c0_7 = arith.constant 0 : index
    %c0_8 = arith.constant 0 : index
    %c0_9 = arith.constant 0 : index
    %c0_10 = arith.constant 0 : index
    %11 = vector.load %arg5[%c0_7, %c0_8, %c0_9, %c0_10] : memref<1x16x16x128xf32, #tpu.memory_space<vmem>>, vector<1x16x16x128xf32>
    tpu.vector_store %arg5[%c0_7, %c0_8, %c0_9, %c0_10], %10 {strides = array<i32>} : memref<1x16x16x128xf32, #tpu.memory_space<vmem>>, vector<1x16x16x128xf32>,
    return
  }
  func.func @transform_0(%arg0: i32, %arg1: i32) -> (i32, i32, i32, i32) {
    %c0_i32 = arith.constant 0 : i32
    %c0_i32_0 = arith.constant 0 : i32
    %c0_i32_1 = arith.constant 0 : i32
    return %arg0, %c0_i32, %c0_i32_0, %arg1 : i32, i32, i32, i32
  }
  func.func @transform_1(%arg0: i32, %arg1: i32) -> (i32, i32) {
    %c0_i32 = arith.constant 0 : i32
    %c0_i32_0 = arith.constant 0 : i32
    return %c0_i32, %arg1 : i32, i32
  }
  func.func @transform_2(%arg0: i32, %arg1: i32) -> (i32, i32) {
    %c0_i32 = arith.constant 0 : i32
    %c0_i32_0 = arith.constant 0 : i32
    return %c0_i32, %arg1 : i32, i32
  }
  func.func @transform_3(%arg0: i32, %arg1: i32) -> (i32, i32, i32, i32) {
    %c0_i32 = arith.constant 0 : i32
    %c0_i32_0 = arith.constant 0 : i32
    %c0_i32_1 = arith.constant 0 : i32
    return %arg0, %c0_i32, %c0_i32_0, %arg1 : i32, i32, i32, i32
  }
}

</mosaic_0001>

<llo_original>
// kernel: conv_block_forward.3
$region0: #{conv_block_forward.3}
  #allocation0 [shape = 'u32[]', space=smem, size = 0x4, offset = 0x4, fixed_abs, tag = 'smem constant byte address 0x4 - core index']
  #allocation1 [shape = 'u32[144,128]{1,0:T(1,128)}', space=vmem, size = 0x12000, scoped, tag = 'internal scratch']
  %s0 = inlined_call_operand.vmem [shape: f32[2,16,16,128], index: 0, kind: input, shape index: {}]
  %s1 = inlined_call_operand.vmem [shape: f32[1,128], index: 1, kind: input, shape index: {}]
  %s2 = inlined_call_operand.vmem [shape: f32[1,128], index: 2, kind: input, shape index: {}]
  %s3 = inlined_call_operand.vmem [shape: f32[2,16,16,128], index: 3, kind: output, shape index: {}]
  %s4 = sld [smem:[#allocation0]]
  $region45: #{conv_block_forward.3} parent=0
    _
  %s6 = ssub.s32 1, %s4
  %s7 = scalar_select 0, %s6, %s4
  loop: start=0, step=1, limit=4
  $region2: #{conv_block_forward.3} parent=0 // loop_pre_header
    _
  $region3: #{conv_block_forward.3} parent=0 // loop_header
    %s9 = sphi 0, %s13
    %p10 = scmp.ge.s32.totalorder %s9, 4
    %s16 = sphi 0, %s28
    %s17 = sphi 0, %s24
    %s18 = sphi 0, %s16
    %s19 = sphi 0, %s17
    %s20 = sphi 0, %s18
    %s21 = sphi 0, %s19
    %s33 = sphi 0, %s35
    %s36 = sphi 0, %s33
    %s37 = sphi 0, %s36
    %s53 = sphi 0, %s37
    %s59 = sphi 0, %s61
    %s62 = sphi 0, %s59
    %s63 = sphi 0, %s62
    %s79 = sphi 0, %s63
    %s85 = sphi 0, %s87
    %s88 = sphi 0, %s85
    %s89 = sphi 0, %s88
    %s105 = sphi 0, %s89
    %s113 = sphi 0, %s115
    %s116 = sphi 0, %s113
    %s117 = sphi 0, %s116
    %s133 = sphi 0, %s117
  $region4: #{conv_block_forward.3} parent=0 // loop_header_branch
    %12 = sbr.rel (%p10) target = $region8
  $region5: #{conv_block_forward.3} parent=0 // loop_body
    %s14 = ssub.s32 %s9, 1
    %s15 = ssub.s32 %s9, 2
    %s22 = sadd.s32 1, %s17
    %p23 = scmp.ge.s32.totalorder %s22, 1
    %s24 = scalar_select %p23, 0, %s22
    %s25 = sadd.s32 1, %s16
    %s26 = scalar_select %p23, %s25, %s16
    %p27 = scmp.ge.s32.totalorder %s26, 2
    %s28 = scalar_select %p27, 0, %s26
    %s29 = ssub.s32 %s16, %s28
    %s30 = ssub.s32 %s17, %s24
    %s31 = sor.u32 %s29, %s30
    %p32 = scmp.eq.s32.totalorder %s31, 0
    %s34 = sadd.s32 %s33, 1
    %s35 = scalar_select %p32, %s33, %s34
    %p38 = pneg %p32
    %p39 = scmp.eq.s32.totalorder %s9, 1
    %p40 = por %p38, %p39
    %p41 = scmp.ne.s32.totalorder %s33, %s36
    %p42 = scmp.eq.s32.totalorder %s9, 0
    %p43 = por %p41, %p42
    %p44 = scmp.ne.s32.totalorder %s33, %s36
    %p45 = scmp.eq.s32.totalorder %s14, 1
    %p46 = por %p44, %p45
    %p47 = scmp.ne.s32.totalorder %s36, %s37
    %p48 = scmp.eq.s32.totalorder %s14, 0
    %p49 = por %p47, %p48
    %p50 = scmp.ne.s32.totalorder %s36, %s37
    %p51 = scmp.eq.s32.totalorder %s15, 1
    %p52 = por %p50, %p51
    %p54 = scmp.ne.s32.totalorder %s37, %s53
    %p55 = scmp.eq.s32.totalorder %s15, 0
    %p56 = por %p54, %p55
    %s57 = ssub.s32 %s17, %s24
    %p58 = scmp.eq.s32.totalorder %s57, 0
    %s60 = sadd.s32 %s59, 1
    %s61 = scalar_select %p58, %s59, %s60
    %p64 = pneg %p58
    %p65 = scmp.eq.s32.totalorder %s9, 1
    %p66 = por %p64, %p65
    %p67 = scmp.ne.s32.totalorder %s59, %s62
    %p68 = scmp.eq.s32.totalorder %s9, 0
    %p69 = por %p67, %p68
    %p70 = scmp.ne.s32.totalorder %s59, %s62
    %p71 = scmp.eq.s32.totalorder %s14, 1
    %p72 = por %p70, %p71
    %p73 = scmp.ne.s32.totalorder %s62, %s63
    %p74 = scmp.eq.s32.totalorder %s14, 0
    %p75 = por %p73, %p74
    %p76 = scmp.ne.s32.totalorder %s62, %s63
    %p77 = scmp.eq.s32.totalorder %s15, 1
    %p78 = por %p76, %p77
    %p80 = scmp.ne.s32.totalorder %s63, %s79
    %p81 = scmp.eq.s32.totalorder %s15, 0
    %p82 = por %p80, %p81
    %s83 = ssub.s32 %s17, %s24
    %p84 = scmp.eq.s32.totalorder %s83, 0
    %s86 = sadd.s32 %s85, 1
    %s87 = scalar_select %p84, %s85, %s86
    %p90 = pneg %p84
    %p91 = scmp.eq.s32.totalorder %s9, 1
    %p92 = por %p90, %p91
    %p93 = scmp.ne.s32.totalorder %s85, %s88
    %p94 = scmp.eq.s32.totalorder %s9, 0
    %p95 = por %p93, %p94
    %p96 = scmp.ne.s32.totalorder %s85, %s88
    %p97 = scmp.eq.s32.totalorder %s14, 1
    %p98 = por %p96, %p97
    %p99 = scmp.ne.s32.totalorder %s88, %s89
    %p100 = scmp.eq.s32.totalorder %s14, 0
    %p101 = por %p99, %p100
    %p102 = scmp.ne.s32.totalorder %s88, %s89
    %p103 = scmp.eq.s32.totalorder %s15, 1
    %p104 = por %p102, %p103
    %p106 = scmp.ne.s32.totalorder %s89, %s105
    %p107 = scmp.eq.s32.totalorder %s15, 0
    %p108 = por %p106, %p107
    %s109 = ssub.s32 %s16, %s28
    %s110 = ssub.s32 %s17, %s24
    %s111 = sor.u32 %s109, %s110
    %p112 = scmp.eq.s32.totalorder %s111, 0
    %s114 = sadd.s32 %s113, 1
    %s115 = scalar_select %p112, %s113, %s114
    %p118 = pneg %p112
    %p119 = scmp.eq.s32.totalorder %s9, 1
    %p120 = por %p118, %p119
    %p121 = scmp.ne.s32.totalorder %s113, %s116
    %p122 = scmp.eq.s32.totalorder %s9, 0
    %p123 = por %p121, %p122
    %p124 = scmp.ne.s32.totalorder %s113, %s116
    %p125 = scmp.eq.s32.totalorder %s14, 1
    %p126 = por %p124, %p125
    %p127 = scmp.ne.s32.totalorder %s116, %s117
    %p128 = scmp.eq.s32.totalorder %s14, 0
    %p129 = por %p127, %p128
    %p130 = scmp.ne.s32.totalorder %s116, %s117
    %p131 = scmp.eq.s32.totalorder %s15, 1
    %p132 = por %p130, %p131
    %p134 = scmp.ne.s32.totalorder %s117, %s133
    %p135 = scmp.eq.s32.totalorder %s15, 0
    %p136 = por %p134, %p135
    %p137 = scmp.le.s32.totalorder 1, %s9
    %p138 = scmp.lt.s32.totalorder %s9, 3
    %p139 = pnand %p137, %p138
    %p140 = pneg %p139
    // Predicated region
    $region9: #{conv_block_forward.3} parent=5 // pred_check
      _
    $region10: #{conv_block_forward.3} parent=5 // pred_check_branch
      %142 = sbr.rel (%p139) target = $region12
    $region11: #{conv_block_forward.3} parent=5 // pred_region
      %s143 = ssub.s32 %s9, 1
      // Predicated region
      $region13: #{conv_block_forward.3} parent=11 // pred_check
        %p144 = pneg %p75
      $region14: #{conv_block_forward.3} parent=11 // pred_check_branch
        %146 = sbr.rel (%p144) target = $region16
      $region15: #{conv_block_forward.3} parent=11 // pred_region
        %p147 = scmp.lt.s32.totalorder %s19, 0
        %s148 = scalar_select %p147, %s19, 0
        %s149 = scalar_lea.vmem %s1, %s148
      $region16: #{conv_block_forward.3} parent=11 // pred_fallthru
        _
      // Predicated region
      $region17: #{conv_block_forward.3} parent=11 // pred_check
        %p150 = pneg %p101
      $region18: #{conv_block_forward.3} parent=11 // pred_check_branch
        %152 = sbr.rel (%p150) target = $region20
      $region19: #{conv_block_forward.3} parent=11 // pred_region
        %p153 = scmp.lt.s32.totalorder %s19, 0
        %s154 = scalar_select %p153, %s19, 0
        %s155 = scalar_lea.vmem %s2, %s154
      $region20: #{conv_block_forward.3} parent=11 // pred_fallthru
        _
    $region12: #{conv_block_forward.3} parent=5 // pred_fallthru
      _
    %p156 = scmp.lt.s32.totalorder %s9, 2
    // Predicated region
    $region21: #{conv_block_forward.3} parent=5 // pred_check
      %p157 = pneg %p156
    $region22: #{conv_block_forward.3} parent=5 // pred_check_branch
      %159 = sbr.rel (%p157) target = $region24
    $region23: #{conv_block_forward.3} parent=5 // pred_region
      // Predicated region
      $region25: #{conv_block_forward.3} parent=23 // pred_check
        %p160 = pneg %p43
      $region26: #{conv_block_forward.3} parent=23 // pred_check_branch
        %162 = sbr.rel (%p160) target = $region28
      $region27: #{conv_block_forward.3} parent=23 // pred_region
        %p163 = scmp.lt.s32.totalorder %s16, 1
        %s164 = scalar_select %p163, %s16, 1
        %p165 = scmp.lt.s32.totalorder %s17, 0
        %s166 = scalar_select %p165, %s17, 0
        %s167 = smul.addr %s164, 32
        %s168 = sadd.s32 %s166, %s167
        %s169 = smul.addr %s168, 8
        %s170 = scalar_lea.vmem %s0, %s169
      $region28: #{conv_block_forward.3} parent=23 // pred_fallthru
        _
    $region24: #{conv_block_forward.3} parent=5 // pred_fallthru
      _
    %p171 = scmp.le.s32.totalorder 1, %s9
    %p172 = scmp.lt.s32.totalorder %s9, 3
    %p173 = pnand %p171, %p172
    %p174 = pneg %p173
    // Predicated region
    $region29: #{conv_block_forward.3} parent=5 // pred_check
      _
    $region30: #{conv_block_forward.3} parent=5 // pred_check_branch
      %176 = sbr.rel (%p173) target = $region32
    $region31: #{conv_block_forward.3} parent=5 // pred_region
      %s177 = ssub.s32 %s9, 1
      %p178 = scmp.lt.s32.totalorder %s18, 1
      %s179 = scalar_select %p178, %s18, 1
      %p180 = scmp.lt.s32.totalorder %s19, 0
      %s181 = scalar_select %p180, %s19, 0
      %s182 = smul.addr %s179, 32
      %s183 = sadd.s32 %s181, %s182
      %s184 = smul.addr %s183, 8
      %s185 = scalar_lea.vmem %s0, %s184
      %p186 = pneg %p49
      %p187 = pneg %p46
      %p188 = scmp.lt.s32.totalorder %s19, 0
      %s189 = scalar_select %p188, %s19, 0
      %s190 = scalar_lea.vmem %s1, %s189
      %p191 = pneg %p75
      %p192 = pneg %p72
      %p193 = scmp.lt.s32.totalorder %s19, 0
      %s194 = scalar_select %p193, %s19, 0
      %s195 = scalar_lea.vmem %s2, %s194
      %p196 = pneg %p101
      %p197 = pneg %p98
      %p198 = pneg %p129
      %p199 = pneg %p126
      %p200 = scmp.lt.s32.totalorder %s18, 1
      %s201 = scalar_select %p200, %s18, 1
      %p202 = scmp.lt.s32.totalorder %s19, 0
      %s203 = scalar_select %p202, %s19, 0
      %s204 = smul.addr %s201, 32
      %s205 = sadd.s32 %s203, %s204
      %s206 = smul.addr %s205, 8
      %s207 = scalar_lea.vmem %s3, %s206
      %p208 = scmp.lt.s32.totalorder %s18, 1
      %s209 = scalar_select %p208, %s18, 1
      %p210 = scmp.lt.s32.totalorder %s19, 0
      %s211 = scalar_select %p210, %s19, 0
      %s212 = smul.addr %s209, 32
      %s213 = sadd.s32 %s211, %s212
      %s214 = smul.addr %s213, 8
      %s215 = scalar_lea.vmem %s0, %s214
      %p216 = scmp.lt.s32.totalorder %s19, 0
      %s217 = scalar_select %p216, %s19, 0
      %s218 = scalar_lea.vmem %s1, %s217
      %p219 = scmp.lt.s32.totalorder %s19, 0
      %s220 = scalar_select %p219, %s19, 0
      %s221 = scalar_lea.vmem %s2, %s220
      %p222 = scmp.lt.s32.totalorder %s18, 1
      %s223 = scalar_select %p222, %s18, 1
      %p224 = scmp.lt.s32.totalorder %s19, 0
      %s225 = scalar_select %p224, %s19, 0
      %s226 = smul.addr %s223, 32
      %s227 = sadd.s32 %s225, %s226
      %s228 = smul.addr %s227, 8
      %s229 = scalar_lea.vmem %s3, %s228
      %v230 = vld [vmem:[%s215] sm:$0xff]
      %v231 = vld [vmem:[%s215 + $0x8] sm:$0xff]
      %v232 = vld [vmem:[%s215 + $0x10] sm:$0xff]
      %v233 = vld [vmem:[%s215 + $0x18] sm:$0xff]
      %v234 = vld [vmem:[%s215 + $0x20] sm:$0xff]
      %v235 = vld [vmem:[%s215 + $0x28] sm:$0xff]
      %v236 = vld [vmem:[%s215 + $0x30] sm:$0xff]
      %v237 = vld [vmem:[%s215 + $0x38] sm:$0xff]
      %v238 = vld [vmem:[%s215 + $0x40] sm:$0xff]
      %v239 = vld [vmem:[%s215 + $0x48] sm:$0xff]
      %v240 = vld [vmem:[%s215 + $0x50] sm:$0xff]
      %v241 = vld [vmem:[%s215 + $0x58] sm:$0xff]
      %v242 = vld [vmem:[%s215 + $0x60] sm:$0xff]
      %v243 = vld [vmem:[%s215 + $0x68] sm:$0xff]
      %v244 = vld [vmem:[%s215 + $0x70] sm:$0xff]
      %v245 = vld [vmem:[%s215 + $0x78] sm:$0xff]
      %v246 = vld [vmem:[%s215 + $0x80] sm:$0xff]
      %v247 = vld [vmem:[%s215 + $0x88] sm:$0xff]
      %v248 = vld [vmem:[%s215 + $0x90] sm:$0xff]
      %v249 = vld [vmem:[%s215 + $0x98] sm:$0xff]
      %v250 = vld [vmem:[%s215 + $0xa0] sm:$0xff]
      %v251 = vld [vmem:[%s215 + $0xa8] sm:$0xff]
      %v252 = vld [vmem:[%s215 + $0xb0] sm:$0xff]
      %v253 = vld [vmem:[%s215 + $0xb8] sm:$0xff]
      %v254 = vld [vmem:[%s215 + $0xc0] sm:$0xff]
      %v255 = vld [vmem:[%s215 + $0xc8] sm:$0xff]
      %v256 = vld [vmem:[%s215 + $0xd0] sm:$0xff]
      %v257 = vld [vmem:[%s215 + $0xd8] sm:$0xff]
      %v258 = vld [vmem:[%s215 + $0xe0] sm:$0xff]
      %v259 = vld [vmem:[%s215 + $0xe8] sm:$0xff]
      %v260 = vld [vmem:[%s215 + $0xf0] sm:$0xff]
      %v261 = vld [vmem:[%s215 + $0xf8] sm:$0xff]
      %v262 = vld [vmem:[%s218] sm:$0x1]
      %v264 = vlaneseq
      %v265 = vshrl.u32 %v264, 7
      %v266 = vsub.s32 0, %v265
      %v267 = vrot.slane %v262, %v266
      %v269 = vmul.f32 %v230, %v267
      %v270 = vmul.f32 %v231, %v267
      %v271 = vmul.f32 %v232, %v267
      %v272 = vmul.f32 %v233, %v267
      %v273 = vmul.f32 %v234, %v267
      %v274 = vmul.f32 %v235, %v267
      %v275 = vmul.f32 %v236, %v267
      %v276 = vmul.f32 %v237, %v267
      %v277 = vmul.f32 %v238, %v267
      %v278 = vmul.f32 %v239, %v267
      %v279 = vmul.f32 %v240, %v267
      %v280 = vmul.f32 %v241, %v267
      %v281 = vmul.f32 %v242, %v267
      %v282 = vmul.f32 %v243, %v267
      %v283 = vmul.f32 %v244, %v267
      %v284 = vmul.f32 %v245, %v267
      %v285 = vmul.f32 %v246, %v267
      %v286 = vmul.f32 %v247, %v267
      %v287 = vmul.f32 %v248, %v267
      %v288 = vmul.f32 %v249, %v267
      %v289 = vmul.f32 %v250, %v267
      %v290 = vmul.f32 %v251, %v267
      %v291 = vmul.f32 %v252, %v267
      %v292 = vmul.f32 %v253, %v267
      %v293 = vmul.f32 %v254, %v267
      %v294 = vmul.f32 %v255, %v267
      %v295 = vmul.f32 %v256, %v267
      %v296 = vmul.f32 %v257, %v267
      %v297 = vmul.f32 %v258, %v267
      %v298 = vmul.f32 %v259, %v267
      %v299 = vmul.f32 %v260, %v267
      %v300 = vmul.f32 %v261, %v267
      %v301 = vld [vmem:[%s221] sm:$0x1]
      %v303 = vlaneseq
      %v304 = vshrl.u32 %v303, 7
      %v305 = vsub.s32 0, %v304
      %v306 = vrot.slane %v301, %v305
      %v308 = vadd.f32 %v269, %v306
      %v309 = vadd.f32 %v270, %v306
      %v310 = vadd.f32 %v271, %v306
      %v311 = vadd.f32 %v272, %v306
      %v312 = vadd.f32 %v273, %v306
      %v313 = vadd.f32 %v274, %v306
      %v314 = vadd.f32 %v275, %v306
      %v315 = vadd.f32 %v276, %v306
      %v316 = vadd.f32 %v277, %v306
      %v317 = vadd.f32 %v278, %v306
      %v318 = vadd.f32 %v279, %v306
      %v319 = vadd.f32 %v280, %v306
      %v320 = vadd.f32 %v281, %v306
      %v321 = vadd.f32 %v282, %v306
      %v322 = vadd.f32 %v283, %v306
      %v323 = vadd.f32 %v284, %v306
      %v324 = vadd.f32 %v285, %v306
      %v325 = vadd.f32 %v286, %v306
      %v326 = vadd.f32 %v287, %v306
      %v327 = vadd.f32 %v288, %v306
      %v328 = vadd.f32 %v289, %v306
      %v329 = vadd.f32 %v290, %v306
      %v330 = vadd.f32 %v291, %v306
      %v331 = vadd.f32 %v292, %v306
      %v332 = vadd.f32 %v293, %v306
      %v333 = vadd.f32 %v294, %v306
      %v334 = vadd.f32 %v295, %v306
      %v335 = vadd.f32 %v296, %v306
      %v336 = vadd.f32 %v297, %v306
      %v337 = vadd.f32 %v298, %v306
      %v338 = vadd.f32 %v299, %v306
      %v339 = vadd.f32 %v300, %v306
      %v340 = vmax.f32 %v308, 0.0
      %v341 = vmax.f32 %v309, 0.0
      %v342 = vmax.f32 %v310, 0.0
      %v343 = vmax.f32 %v311, 0.0
      %v344 = vmax.f32 %v312, 0.0
      %v345 = vmax.f32 %v313, 0.0
      %v346 = vmax.f32 %v314, 0.0
      %v347 = vmax.f32 %v315, 0.0
      %v348 = vmax.f32 %v316, 0.0
      %v349 = vmax.f32 %v317, 0.0
      %v350 = vmax.f32 %v318, 0.0
      %v351 = vmax.f32 %v319, 0.0
      %v352 = vmax.f32 %v320, 0.0
      %v353 = vmax.f32 %v321, 0.0
      %v354 = vmax.f32 %v322, 0.0
      %v355 = vmax.f32 %v323, 0.0
      %v356 = vmax.f32 %v324, 0.0
      %v357 = vmax.f32 %v325, 0.0
      %v358 = vmax.f32 %v326, 0.0
      %v359 = vmax.f32 %v327, 0.0
      %v360 = vmax.f32 %v328, 0.0
      %v361 = vmax.f32 %v329, 0.0
      %v362 = vmax.f32 %v330, 0.0
      %v363 = vmax.f32 %v331, 0.0
      %v364 = vmax.f32 %v332, 0.0
      %v365 = vmax.f32 %v333, 0.0
      %v366 = vmax.f32 %v334, 0.0
      %v367 = vmax.f32 %v335, 0.0
      %v368 = vmax.f32 %v336, 0.0
      %v369 = vmax.f32 %v337, 0.0
      %v370 = vmax.f32 %v338, 0.0
      %v371 = vmax.f32 %v339, 0.0
      %372 = vst [vmem:[%s229] sm:$0xff] %v340
      %373 = vst [vmem:[%s229 + $0x8] sm:$0xff] %v341
      %374 = vst [vmem:[%s229 + $0x10] sm:$0xff] %v342
      %375 = vst [vmem:[%s229 + $0x18] sm:$0xff] %v343
      %376 = vst [vmem:[%s229 + $0x20] sm:$0xff] %v344
      %377 = vst [vmem:[%s229 + $0x28] sm:$0xff] %v345
      %378 = vst [vmem:[%s229 + $0x30] sm:$0xff] %v346
      %379 = vst [vmem:[%s229 + $0x38] sm:$0xff] %v347
      %380 = vst [vmem:[%s229 + $0x40] sm:$0xff] %v348
      %381 = vst [vmem:[%s229 + $0x48] sm:$0xff] %v349
      %382 = vst [vmem:[%s229 + $0x50] sm:$0xff] %v350
      %383 = vst [vmem:[%s229 + $0x58] sm:$0xff] %v351
      %384 = vst [vmem:[%s229 + $0x60] sm:$0xff] %v352
      %385 = vst [vmem:[%s229 + $0x68] sm:$0xff] %v353
      %386 = vst [vmem:[%s229 + $0x70] sm:$0xff] %v354
      %387 = vst [vmem:[%s229 + $0x78] sm:$0xff] %v355
      %388 = vst [vmem:[%s229 + $0x80] sm:$0xff] %v356
      %389 = vst [vmem:[%s229 + $0x88] sm:$0xff] %v357
      %390 = vst [vmem:[%s229 + $0x90] sm:$0xff] %v358
      %391 = vst [vmem:[%s229 + $0x98] sm:$0xff] %v359
      %392 = vst [vmem:[%s229 + $0xa0] sm:$0xff] %v360
      %393 = vst [vmem:[%s229 + $0xa8] sm:$0xff] %v361
      %394 = vst [vmem:[%s229 + $0xb0] sm:$0xff] %v362
      %395 = vst [vmem:[%s229 + $0xb8] sm:$0xff] %v363
      %396 = vst [vmem:[%s229 + $0xc0] sm:$0xff] %v364
      %397 = vst [vmem:[%s229 + $0xc8] sm:$0xff] %v365
      %398 = vst [vmem:[%s229 + $0xd0] sm:$0xff] %v366
      %399 = vst [vmem:[%s229 + $0xd8] sm:$0xff] %v367
      %400 = vst [vmem:[%s229 + $0xe0] sm:$0xff] %v368
      %401 = vst [vmem:[%s229 + $0xe8] sm:$0xff] %v369
      %402 = vst [vmem:[%s229 + $0xf0] sm:$0xff] %v370
      %403 = vst [vmem:[%s229 + $0xf8] sm:$0xff] %v371
      %p404 = scmp.lt.s32.totalorder %s18, 1
      %s405 = scalar_select %p404, %s18, 1
      %p406 = scmp.lt.s32.totalorder %s19, 0
      %s407 = scalar_select %p406, %s19, 0
      %s408 = smul.addr %s405, 32
      %s409 = sadd.s32 %s407, %s408
      %s410 = smul.addr %s409, 8
      %s411 = scalar_lea.vmem %s3, %s410
      // Predicated region
      $region33: #{conv_block_forward.3} parent=31 // pred_check
        %p412 = pneg %p126
      $region34: #{conv_block_forward.3} parent=31 // pred_check_branch
        %414 = sbr.rel (%p412) target = $region36
      $region35: #{conv_block_forward.3} parent=31 // pred_region
        _
      $region36: #{conv_block_forward.3} parent=31 // pred_fallthru
        _
    $region32: #{conv_block_forward.3} parent=5 // pred_fallthru
      _
    %p415 = scmp.le.s32.totalorder 2, %s9
    // Predicated region
    $region37: #{conv_block_forward.3} parent=5 // pred_check
      %p416 = pneg %p415
    $region38: #{conv_block_forward.3} parent=5 // pred_check_branch
      %418 = sbr.rel (%p416) target = $region40
    $region39: #{conv_block_forward.3} parent=5 // pred_region
      %s419 = ssub.s32 %s9, 2
      // Predicated region
      $region41: #{conv_block_forward.3} parent=39 // pred_check
        %p420 = pneg %p132
      $region42: #{conv_block_forward.3} parent=39 // pred_check_branch
        %422 = sbr.rel (%p420) target = $region44
      $region43: #{conv_block_forward.3} parent=39 // pred_region
        %p423 = scmp.lt.s32.totalorder %s20, 1
        %s424 = scalar_select %p423, %s20, 1
        %p425 = scmp.lt.s32.totalorder %s21, 0
        %s426 = scalar_select %p425, %s21, 0
        %s427 = smul.addr %s424, 32
        %s428 = sadd.s32 %s426, %s427
        %s429 = smul.addr %s428, 8
        %s430 = scalar_lea.vmem %s3, %s429
      $region44: #{conv_block_forward.3} parent=39 // pred_fallthru
        _
    $region40: #{conv_block_forward.3} parent=5 // pred_fallthru
      _
  $region6: #{conv_block_forward.3} parent=0 // loop_footer
    %s13 = sadd.s32 1, %s9
  $region7: #{conv_block_forward.3} parent=0 // loop_footer_branch
    %8 = sbr.rel target = $region3
  $region8: #{conv_block_forward.3} parent=0 // loop_exit
    _

// kernel: conv_block_forward.2
$region0: #{conv_block_forward.2}
  #allocation0 [shape = 'u32[]', space=smem, size = 0x4, offset = 0x4, fixed_abs, tag = 'smem constant byte address 0x4 - core index']
  #allocation1 [shape = 'u32[144,128]{1,0:T(1,128)}', space=vmem, size = 0x12000, scoped, tag = 'internal scratch']
  %s0 = inlined_call_operand.vmem [shape: bf16[2,18,18,4], index: 0, kind: input, shape index: {}]
  %s1 = inlined_call_operand.vmem [shape: bf16[36,128], index: 1, kind: input, shape index: {}]
  %s2 = inlined_call_operand.vmem [shape: f32[2,16,16,128], index: 2, kind: output, shape index: {0}]
  %s3 = inlined_call_operand.vmem [shape: f32[2,2,128], index: 3, kind: output, shape index: {1}]
  %4 = xla_tuple %s2, %s3
  %s5 = sld [smem:[#allocation0]]
  $region49: #{conv_block_forward.2} parent=0
    _
  %s7 = ssub.s32 1, %s5
  %s8 = scalar_select 0, %s7, %s5
  loop: start=0, step=1, limit=4
  $region2: #{conv_block_forward.2} parent=0 // loop_pre_header
    _
  $region3: #{conv_block_forward.2} parent=0 // loop_header
    %s10 = sphi 0, %s14
    %p11 = scmp.ge.s32.totalorder %s10, 4
    %s17 = sphi 0, %s29
    %s18 = sphi 0, %s25
    %s19 = sphi 0, %s17
    %s20 = sphi 0, %s18
    %s21 = sphi 0, %s19
    %s22 = sphi 0, %s20
    %s32 = sphi 0, %s34
    %s35 = sphi 0, %s32
    %s36 = sphi 0, %s35
    %s52 = sphi 0, %s36
    %s58 = sphi 0, %s60
    %s61 = sphi 0, %s58
    %s62 = sphi 0, %s61
    %s78 = sphi 0, %s62
    %s86 = sphi 0, %s88
    %s89 = sphi 0, %s86
    %s90 = sphi 0, %s89
    %s106 = sphi 0, %s90
    %s114 = sphi 0, %s116
    %s117 = sphi 0, %s114
    %s118 = sphi 0, %s117
    %s134 = sphi 0, %s118
  $region4: #{conv_block_forward.2} parent=0 // loop_header_branch
    %13 = sbr.rel (%p11) target = $region8
  $region5: #{conv_block_forward.2} parent=0 // loop_body
    %s15 = ssub.s32 %s10, 1
    %s16 = ssub.s32 %s10, 2
    %s23 = sadd.s32 1, %s18
    %p24 = scmp.ge.s32.totalorder %s23, 1
    %s25 = scalar_select %p24, 0, %s23
    %s26 = sadd.s32 1, %s17
    %s27 = scalar_select %p24, %s26, %s17
    %p28 = scmp.ge.s32.totalorder %s27, 2
    %s29 = scalar_select %p28, 0, %s27
    %s30 = ssub.s32 %s17, %s29
    %p31 = scmp.eq.s32.totalorder %s30, 0
    %s33 = sadd.s32 %s32, 1
    %s34 = scalar_select %p31, %s32, %s33
    %p37 = pneg %p31
    %p38 = scmp.eq.s32.totalorder %s10, 1
    %p39 = por %p37, %p38
    %p40 = scmp.ne.s32.totalorder %s32, %s35
    %p41 = scmp.eq.s32.totalorder %s10, 0
    %p42 = por %p40, %p41
    %p43 = scmp.ne.s32.totalorder %s32, %s35
    %p44 = scmp.eq.s32.totalorder %s15, 1
    %p45 = por %p43, %p44
    %p46 = scmp.ne.s32.totalorder %s35, %s36
    %p47 = scmp.eq.s32.totalorder %s15, 0
    %p48 = por %p46, %p47
    %p49 = scmp.ne.s32.totalorder %s35, %s36
    %p50 = scmp.eq.s32.totalorder %s16, 1
    %p51 = por %p49, %p50
    %p53 = scmp.ne.s32.totalorder %s36, %s52
    %p54 = scmp.eq.s32.totalorder %s16, 0
    %p55 = por %p53, %p54
    %s56 = ssub.s32 %s18, %s25
    %p57 = scmp.eq.s32.totalorder %s56, 0
    %s59 = sadd.s32 %s58, 1
    %s60 = scalar_select %p57, %s58, %s59
    %p63 = pneg %p57
    %p64 = scmp.eq.s32.totalorder %s10, 1
    %p65 = por %p63, %p64
    %p66 = scmp.ne.s32.totalorder %s58, %s61
    %p67 = scmp.eq.s32.totalorder %s10, 0
    %p68 = por %p66, %p67
    %p69 = scmp.ne.s32.totalorder %s58, %s61
    %p70 = scmp.eq.s32.totalorder %s15, 1
    %p71 = por %p69, %p70
    %p72 = scmp.ne.s32.totalorder %s61, %s62
    %p73 = scmp.eq.s32.totalorder %s15, 0
    %p74 = por %p72, %p73
    %p75 = scmp.ne.s32.totalorder %s61, %s62
    %p76 = scmp.eq.s32.totalorder %s16, 1
    %p77 = por %p75, %p76
    %p79 = scmp.ne.s32.totalorder %s62, %s78
    %p80 = scmp.eq.s32.totalorder %s16, 0
    %p81 = por %p79, %p80
    %s82 = ssub.s32 %s17, %s29
    %s83 = ssub.s32 %s18, %s25
    %s84 = sor.u32 %s82, %s83
    %p85 = scmp.eq.s32.totalorder %s84, 0
    %s87 = sadd.s32 %s86, 1
    %s88 = scalar_select %p85, %s86, %s87
    %p91 = pneg %p85
    %p92 = scmp.eq.s32.totalorder %s10, 1
    %p93 = por %p91, %p92
    %p94 = scmp.ne.s32.totalorder %s86, %s89
    %p95 = scmp.eq.s32.totalorder %s10, 0
    %p96 = por %p94, %p95
    %p97 = scmp.ne.s32.totalorder %s86, %s89
    %p98 = scmp.eq.s32.totalorder %s15, 1
    %p99 = por %p97, %p98
    %p100 = scmp.ne.s32.totalorder %s89, %s90
    %p101 = scmp.eq.s32.totalorder %s15, 0
    %p102 = por %p100, %p101
    %p103 = scmp.ne.s32.totalorder %s89, %s90
    %p104 = scmp.eq.s32.totalorder %s16, 1
    %p105 = por %p103, %p104
    %p107 = scmp.ne.s32.totalorder %s90, %s106
    %p108 = scmp.eq.s32.totalorder %s16, 0
    %p109 = por %p107, %p108
    %s110 = ssub.s32 %s17, %s29
    %s111 = ssub.s32 %s18, %s25
    %s112 = sor.u32 %s110, %s111
    %p113 = scmp.eq.s32.totalorder %s112, 0
    %s115 = sadd.s32 %s114, 1
    %s116 = scalar_select %p113, %s114, %s115
    %p119 = pneg %p113
    %p120 = scmp.eq.s32.totalorder %s10, 1
    %p121 = por %p119, %p120
    %p122 = scmp.ne.s32.totalorder %s114, %s117
    %p123 = scmp.eq.s32.totalorder %s10, 0
    %p124 = por %p122, %p123
    %p125 = scmp.ne.s32.totalorder %s114, %s117
    %p126 = scmp.eq.s32.totalorder %s15, 1
    %p127 = por %p125, %p126
    %p128 = scmp.ne.s32.totalorder %s117, %s118
    %p129 = scmp.eq.s32.totalorder %s15, 0
    %p130 = por %p128, %p129
    %p131 = scmp.ne.s32.totalorder %s117, %s118
    %p132 = scmp.eq.s32.totalorder %s16, 1
    %p133 = por %p131, %p132
    %p135 = scmp.ne.s32.totalorder %s118, %s134
    %p136 = scmp.eq.s32.totalorder %s16, 0
    %p137 = por %p135, %p136
    %p138 = scmp.le.s32.totalorder 1, %s10
    %p139 = scmp.lt.s32.totalorder %s10, 3
    %p140 = pnand %p138, %p139
    %p141 = pneg %p140
    // Predicated region
    $region9: #{conv_block_forward.2} parent=5 // pred_check
      _
    $region10: #{conv_block_forward.2} parent=5 // pred_check_branch
      %143 = sbr.rel (%p140) target = $region12
    $region11: #{conv_block_forward.2} parent=5 // pred_region
      %s144 = ssub.s32 %s10, 1
      // Predicated region
      $region13: #{conv_block_forward.2} parent=11 // pred_check
        %p145 = pneg %p74
      $region14: #{conv_block_forward.2} parent=11 // pred_check_branch
        %147 = sbr.rel (%p145) target = $region16
      $region15: #{conv_block_forward.2} parent=11 // pred_region
        %p148 = scmp.lt.s32.totalorder %s20, 0
        %s149 = scalar_select %p148, %s20, 0
        %s150 = smul.addr %s149, 4
        %s151 = scalar_lea.vmem %s1, %s150
      $region16: #{conv_block_forward.2} parent=11 // pred_fallthru
        _
    $region12: #{conv_block_forward.2} parent=5 // pred_fallthru
      _
    %p152 = scmp.lt.s32.totalorder %s10, 2
    // Predicated region
    $region17: #{conv_block_forward.2} parent=5 // pred_check
      %p153 = pneg %p152
    $region18: #{conv_block_forward.2} parent=5 // pred_check_branch
      %155 = sbr.rel (%p153) target = $region20
    $region19: #{conv_block_forward.2} parent=5 // pred_region
      // Predicated region
      $region21: #{conv_block_forward.2} parent=19 // pred_check
        %p156 = pneg %p42
      $region22: #{conv_block_forward.2} parent=19 // pred_check_branch
        %158 = sbr.rel (%p156) target = $region24
      $region23: #{conv_block_forward.2} parent=19 // pred_region
        %p159 = scmp.lt.s32.totalorder %s17, 1
        %s160 = scalar_select %p159, %s17, 1
        %s161 = smul.addr %s160, 54
        %s162 = smul.addr %s161, 4
        %s163 = scalar_lea.vmem %s0, %s162
      $region24: #{conv_block_forward.2} parent=19 // pred_fallthru
        _
    $region20: #{conv_block_forward.2} parent=5 // pred_fallthru
      _
    %p164 = scmp.le.s32.totalorder 1, %s10
    %p165 = scmp.lt.s32.totalorder %s10, 3
    %p166 = pnand %p164, %p165
    %p167 = pneg %p166
    // Predicated region
    $region25: #{conv_block_forward.2} parent=5 // pred_check
      _
    $region26: #{conv_block_forward.2} parent=5 // pred_check_branch
      %169 = sbr.rel (%p166) target = $region28
    $region27: #{conv_block_forward.2} parent=5 // pred_region
      %s170 = ssub.s32 %s10, 1
      %p171 = scmp.lt.s32.totalorder %s19, 1
      %s172 = scalar_select %p171, %s19, 1
      %s173 = smul.addr %s172, 54
      %s174 = smul.addr %s173, 4
      %s175 = scalar_lea.vmem %s0, %s174
      %p176 = pneg %p48
      %p177 = pneg %p45
      %p178 = scmp.lt.s32.totalorder %s20, 0
      %s179 = scalar_select %p178, %s20, 0
      %s180 = smul.addr %s179, 4
      %s181 = scalar_lea.vmem %s1, %s180
      %p182 = pneg %p74
      %p183 = pneg %p71
      %p184 = pneg %p102
      %p185 = pneg %p99
      %p186 = scmp.lt.s32.totalorder %s19, 1
      %s187 = scalar_select %p186, %s19, 1
      %p188 = scmp.lt.s32.totalorder %s20, 0
      %s189 = scalar_select %p188, %s20, 0
      %s190 = smul.addr %s187, 32
      %s191 = sadd.s32 %s189, %s190
      %s192 = smul.addr %s191, 8
      %s193 = scalar_lea.vmem %s2, %s192
      %p194 = pneg %p130
      %p195 = pneg %p127
      %p196 = scmp.lt.s32.totalorder %s19, 1
      %s197 = scalar_select %p196, %s19, 1
      %p198 = scmp.lt.s32.totalorder %s20, 0
      %s199 = scalar_select %p198, %s20, 0
      %s200 = sadd.s32 %s199, %s197
      %s201 = smul.addr %s200, 2
      %s202 = scalar_lea.vmem %s3, %s201
      %p203 = scmp.lt.s32.totalorder %s19, 1
      %s204 = scalar_select %p203, %s19, 1
      %s205 = smul.addr %s204, 54
      %s206 = smul.addr %s205, 4
      %s207 = scalar_lea.vmem %s0, %s206
      %p208 = scmp.lt.s32.totalorder %s20, 0
      %s209 = scalar_select %p208, %s20, 0
      %s210 = smul.addr %s209, 4
      %s211 = scalar_lea.vmem %s1, %s210
      %p212 = scmp.lt.s32.totalorder %s19, 1
      %s213 = scalar_select %p212, %s19, 1
      %p214 = scmp.lt.s32.totalorder %s20, 0
      %s215 = scalar_select %p214, %s20, 0
      %s216 = smul.addr %s213, 32
      %s217 = sadd.s32 %s215, %s216
      %s218 = smul.addr %s217, 8
      %s219 = scalar_lea.vmem %s2, %s218
      %p220 = scmp.lt.s32.totalorder %s19, 1
      %s221 = scalar_select %p220, %s19, 1
      %p222 = scmp.lt.s32.totalorder %s20, 0
      %s223 = scalar_select %p222, %s20, 0
      %s224 = sadd.s32 %s223, %s221
      %s225 = smul.addr %s224, 2
      %s226 = scalar_lea.vmem %s3, %s225
      %v228 = vld [vmem:[%s207] sm:$0xf]
      %v229 = vld [vmem:[%s207 + $0x4] sm:$0xf]
      %v230 = vld [vmem:[%s207 + $0xc] sm:$0xf]
      %v231 = vld [vmem:[%s207 + $0x10] sm:$0xf]
      %v232 = vld [vmem:[%s207 + $0x18] sm:$0xf]
      %v233 = vld [vmem:[%s207 + $0x1c] sm:$0xf]
      %v234 = vld [vmem:[%s207 + $0x24] sm:$0xf]
      %v235 = vld [vmem:[%s207 + $0x28] sm:$0xf]
      %v236 = vld [vmem:[%s207 + $0x30] sm:$0xf]
      %v237 = vld [vmem:[%s207 + $0x34] sm:$0xf]
      %v238 = vld [vmem:[%s207 + $0x3c] sm:$0xf]
      %v239 = vld [vmem:[%s207 + $0x40] sm:$0xf]
      %v240 = vld [vmem:[%s207 + $0x48] sm:$0xf]
      %v241 = vld [vmem:[%s207 + $0x4c] sm:$0xf]
      %v242 = vld [vmem:[%s207 + $0x54] sm:$0xf]
      %v243 = vld [vmem:[%s207 + $0x58] sm:$0xf]
      %v244 = vld [vmem:[%s207 + $0x60] sm:$0xf]
      %v245 = vld [vmem:[%s207 + $0x64] sm:$0xf]
      %v246 = vld [vmem:[%s207 + $0x6c] sm:$0xf]
      %v247 = vld [vmem:[%s207 + $0x70] sm:$0xf]
      %v248 = vld [vmem:[%s207 + $0x78] sm:$0xf]
      %v249 = vld [vmem:[%s207 + $0x7c] sm:$0xf]
      %v250 = vld [vmem:[%s207 + $0x84] sm:$0xf]
      %v251 = vld [vmem:[%s207 + $0x88] sm:$0xf]
      %v252 = vld [vmem:[%s207 + $0x90] sm:$0xf]
      %v253 = vld [vmem:[%s207 + $0x94] sm:$0xf]
      %v254 = vld [vmem:[%s207 + $0x9c] sm:$0xf]
      %v255 = vld [vmem:[%s207 + $0xa0] sm:$0xf]
      %v256 = vld [vmem:[%s207 + $0xa8] sm:$0xf]
      %v257 = vld [vmem:[%s207 + $0xac] sm:$0xf]
      %v258 = vld [vmem:[%s207 + $0xb4] sm:$0xf]
      %v259 = vld [vmem:[%s207 + $0xb8] sm:$0xf]
      %v260 = vld [vmem:[%s207 + $0x8] sm:$0x1]
      %v261 = vld [vmem:[%s207 + $0x14] sm:$0x1]
      %v262 = vld [vmem:[%s207 + $0x20] sm:$0x1]
      %v263 = vld [vmem:[%s207 + $0x2c] sm:$0x1]
      %v264 = vld [vmem:[%s207 + $0x38] sm:$0x1]
      %v265 = vld [vmem:[%s207 + $0x44] sm:$0x1]
      %v266 = vld [vmem:[%s207 + $0x50] sm:$0x1]
      %v267 = vld [vmem:[%s207 + $0x5c] sm:$0x1]
      %v268 = vld [vmem:[%s207 + $0x68] sm:$0x1]
      %v269 = vld [vmem:[%s207 + $0x74] sm:$0x1]
      %v270 = vld [vmem:[%s207 + $0x80] sm:$0x1]
      %v271 = vld [vmem:[%s207 + $0x8c] sm:$0x1]
      %v272 = vld [vmem:[%s207 + $0x98] sm:$0x1]
      %v273 = vld [vmem:[%s207 + $0xa4] sm:$0x1]
      %v274 = vld [vmem:[%s207 + $0xb0] sm:$0x1]
      %v275 = vld [vmem:[%s207 + $0xbc] sm:$0x1]
      %v276 = vld [vmem:[%s207] sm:$0xe]
      %v277 = vld [vmem:[%s207 + $0xc] sm:$0xe]
      %v278 = vld [vmem:[%s207 + $0x18] sm:$0xe]
      %v279 = vld [vmem:[%s207 + $0x24] sm:$0xe]
      %v280 = vld [vmem:[%s207 + $0x30] sm:$0xe]
      %v281 = vld [vmem:[%s207 + $0x3c] sm:$0xe]
      %v282 = vld [vmem:[%s207 + $0x48] sm:$0xe]
      %v283 = vld [vmem:[%s207 + $0x54] sm:$0xe]
      %v284 = vld [vmem:[%s207 + $0x60] sm:$0xe]
      %v285 = vld [vmem:[%s207 + $0x6c] sm:$0xe]
      %v286 = vld [vmem:[%s207 + $0x78] sm:$0xe]
      %v287 = vld [vmem:[%s207 + $0x84] sm:$0xe]
      %v288 = vld [vmem:[%s207 + $0x90] sm:$0xe]
      %v289 = vld [vmem:[%s207 + $0x9c] sm:$0xe]
      %v290 = vld [vmem:[%s207 + $0xa8] sm:$0xe]
      %v291 = vld [vmem:[%s207 + $0xb4] sm:$0xe]
      %s292 = scalar_lea.vmem %s207, 12
      %v293 = vld [vmem:[%s292] sm:$0xf]
      %v294 = vld [vmem:[%s292 + $0x4] sm:$0xf]
      %v295 = vld [vmem:[%s292 + $0xc] sm:$0xf]
      %v296 = vld [vmem:[%s292 + $0x10] sm:$0xf]
      %v297 = vld [vmem:[%s292 + $0x18] sm:$0xf]
      %v298 = vld [vmem:[%s292 + $0x1c] sm:$0xf]
      %v299 = vld [vmem:[%s292 + $0x24] sm:$0xf]
      %v300 = vld [vmem:[%s292 + $0x28] sm:$0xf]
      %v301 = vld [vmem:[%s292 + $0x30] sm:$0xf]
      %v302 = vld [vmem:[%s292 + $0x34] sm:$0xf]
      %v303 = vld [vmem:[%s292 + $0x3c] sm:$0xf]
      %v304 = vld [vmem:[%s292 + $0x40] sm:$0xf]
      %v305 = vld [vmem:[%s292 + $0x48] sm:$0xf]
      %v306 = vld [vmem:[%s292 + $0x4c] sm:$0xf]
      %v307 = vld [vmem:[%s292 + $0x54] sm:$0xf]
      %v308 = vld [vmem:[%s292 + $0x58] sm:$0xf]
      %v309 = vld [vmem:[%s292 + $0x60] sm:$0xf]
      %v310 = vld [vmem:[%s292 + $0x64] sm:$0xf]
      %v311 = vld [vmem:[%s292 + $0x6c] sm:$0xf]
      %v312 = vld [vmem:[%s292 + $0x70] sm:$0xf]
      %v313 = vld [vmem:[%s292 + $0x78] sm:$0xf]
      %v314 = vld [vmem:[%s292 + $0x7c] sm:$0xf]
      %v315 = vld [vmem:[%s292 + $0x84] sm:$0xf]
      %v316 = vld [vmem:[%s292 + $0x88] sm:$0xf]
      %v317 = vld [vmem:[%s292 + $0x90] sm:$0xf]
      %v318 = vld [vmem:[%s292 + $0x94] sm:$0xf]
      %v319 = vld [vmem:[%s292 + $0x9c] sm:$0xf]
      %v320 = vld [vmem:[%s292 + $0xa0] sm:$0xf]
      %v321 = vld [vmem:[%s292 + $0xa8] sm:$0xf]
      %v322 = vld [vmem:[%s292 + $0xac] sm:$0xf]
      %v323 = vld [vmem:[%s292 + $0xb4] sm:$0xf]
      %v324 = vld [vmem:[%s292 + $0xb8] sm:$0xf]
      %v325 = vld [vmem:[%s292 + $0x8] sm:$0x1]
      %v326 = vld [vmem:[%s292 + $0x14] sm:$0x1]
      %v327 = vld [vmem:[%s292 + $0x20] sm:$0x1]
      %v328 = vld [vmem:[%s292 + $0x2c] sm:$0x1]
      %v329 = vld [vmem:[%s292 + $0x38] sm:$0x1]
      %v330 = vld [vmem:[%s292 + $0x44] sm:$0x1]
      %v331 = vld [vmem:[%s292 + $0x50] sm:$0x1]
      %v332 = vld [vmem:[%s292 + $0x5c] sm:$0x1]
      %v333 = vld [vmem:[%s292 + $0x68] sm:$0x1]
      %v334 = vld [vmem:[%s292 + $0x74] sm:$0x1]
      %v335 = vld [vmem:[%s292 + $0x80] sm:$0x1]
      %v336 = vld [vmem:[%s292 + $0x8c] sm:$0x1]
      %v337 = vld [vmem:[%s292 + $0x98] sm:$0x1]
      %v338 = vld [vmem:[%s292 + $0xa4] sm:$0x1]
      %v339 = vld [vmem:[%s292 + $0xb0] sm:$0x1]
      %v340 = vld [vmem:[%s292 + $0xbc] sm:$0x1]
      %v341 = vld [vmem:[%s292] sm:$0xe]
      %v342 = vld [vmem:[%s292 + $0xc] sm:$0xe]
      %v343 = vld [vmem:[%s292 + $0x18] sm:$0xe]
      %v344 = vld [vmem:[%s292 + $0x24] sm:$0xe]
      %v345 = vld [vmem:[%s292 + $0x30] sm:$0xe]
      %v346 = vld [vmem:[%s292 + $0x3c] sm:$0xe]
      %v347 = vld [vmem:[%s292 + $0x48] sm:$0xe]
      %v348 = vld [vmem:[%s292 + $0x54] sm:$0xe]
      %v349 = vld [vmem:[%s292 + $0x60] sm:$0xe]
      %v350 = vld [vmem:[%s292 + $0x6c] sm:$0xe]
      %v351 = vld [vmem:[%s292 + $0x78] sm:$0xe]
      %v352 = vld [vmem:[%s292 + $0x84] sm:$0xe]
      %v353 = vld [vmem:[%s292 + $0x90] sm:$0xe]
      %v354 = vld [vmem:[%s292 + $0x9c] sm:$0xe]
      %v355 = vld [vmem:[%s292 + $0xa8] sm:$0xe]
      %v356 = vld [vmem:[%s292 + $0xb4] sm:$0xe]
      %s357 = scalar_lea.vmem %s207, 24
      %v358 = vld [vmem:[%s357] sm:$0xf]
      %v359 = vld [vmem:[%s357 + $0x4] sm:$0xf]
      %v360 = vld [vmem:[%s357 + $0xc] sm:$0xf]
      %v361 = vld [vmem:[%s357 + $0x10] sm:$0xf]
      %v362 = vld [vmem:[%s357 + $0x18] sm:$0xf]
      %v363 = vld [vmem:[%s357 + $0x1c] sm:$0xf]
      %v364 = vld [vmem:[%s357 + $0x24] sm:$0xf]
      %v365 = vld [vmem:[%s357 + $0x28] sm:$0xf]
      %v366 = vld [vmem:[%s357 + $0x30] sm:$0xf]
      %v367 = vld [vmem:[%s357 + $0x34] sm:$0xf]
      %v368 = vld [vmem:[%s357 + $0x3c] sm:$0xf]
      %v369 = vld [vmem:[%s357 + $0x40] sm:$0xf]
      %v370 = vld [vmem:[%s357 + $0x48] sm:$0xf]
      %v371 = vld [vmem:[%s357 + $0x4c] sm:$0xf]
      %v372 = vld [vmem:[%s357 + $0x54] sm:$0xf]
      %v373 = vld [vmem:[%s357 + $0x58] sm:$0xf]
      %v374 = vld [vmem:[%s357 + $0x60] sm:$0xf]
      %v375 = vld [vmem:[%s357 + $0x64] sm:$0xf]
      %v376 = vld [vmem:[%s357 + $0x6c] sm:$0xf]
      %v377 = vld [vmem:[%s357 + $0x70] sm:$0xf]
      %v378 = vld [vmem:[%s357 + $0x78] sm:$0xf]
      %v379 = vld [vmem:[%s357 + $0x7c] sm:$0xf]
      %v380 = vld [vmem:[%s357 + $0x84] sm:$0xf]
      %v381 = vld [vmem:[%s357 + $0x88] sm:$0xf]
      %v382 = vld [vmem:[%s357 + $0x90] sm:$0xf]
      %v383 = vld [vmem:[%s357 + $0x94] sm:$0xf]
      %v384 = vld [vmem:[%s357 + $0x9c] sm:$0xf]
      %v385 = vld [vmem:[%s357 + $0xa0] sm:$0xf]
      %v386 = vld [vmem:[%s357 + $0xa8] sm:$0xf]
      %v387 = vld [vmem:[%s357 + $0xac] sm:$0xf]
      %v388 = vld [vmem:[%s357 + $0xb4] sm:$0xf]
      %v389 = vld [vmem:[%s357 + $0xb8] sm:$0xf]
      %v390 = vld [vmem:[%s357 + $0x8] sm:$0x1]
      %v391 = vld [vmem:[%s357 + $0x14] sm:$0x1]
      %v392 = vld [vmem:[%s357 + $0x20] sm:$0x1]
      %v393 = vld [vmem:[%s357 + $0x2c] sm:$0x1]
      %v394 = vld [vmem:[%s357 + $0x38] sm:$0x1]
      %v395 = vld [vmem:[%s357 + $0x44] sm:$0x1]
      %v396 = vld [vmem:[%s357 + $0x50] sm:$0x1]
      %v397 = vld [vmem:[%s357 + $0x5c] sm:$0x1]
      %v398 = vld [vmem:[%s357 + $0x68] sm:$0x1]
      %v399 = vld [vmem:[%s357 + $0x74] sm:$0x1]
      %v400 = vld [vmem:[%s357 + $0x80] sm:$0x1]
      %v401 = vld [vmem:[%s357 + $0x8c] sm:$0x1]
      %v402 = vld [vmem:[%s357 + $0x98] sm:$0x1]
      %v403 = vld [vmem:[%s357 + $0xa4] sm:$0x1]
      %v404 = vld [vmem:[%s357 + $0xb0] sm:$0x1]
      %v405 = vld [vmem:[%s357 + $0xbc] sm:$0x1]
      %v406 = vld [vmem:[%s357] sm:$0xe]
      %v407 = vld [vmem:[%s357 + $0xc] sm:$0xe]
      %v408 = vld [vmem:[%s357 + $0x18] sm:$0xe]
      %v409 = vld [vmem:[%s357 + $0x24] sm:$0xe]
      %v410 = vld [vmem:[%s357 + $0x30] sm:$0xe]
      %v411 = vld [vmem:[%s357 + $0x3c] sm:$0xe]
      %v412 = vld [vmem:[%s357 + $0x48] sm:$0xe]
      %v413 = vld [vmem:[%s357 + $0x54] sm:$0xe]
      %v414 = vld [vmem:[%s357 + $0x60] sm:$0xe]
      %v415 = vld [vmem:[%s357 + $0x6c] sm:$0xe]
      %v416 = vld [vmem:[%s357 + $0x78] sm:$0xe]
      %v417 = vld [vmem:[%s357 + $0x84] sm:$0xe]
      %v418 = vld [vmem:[%s357 + $0x90] sm:$0xe]
      %v419 = vld [vmem:[%s357 + $0x9c] sm:$0xe]
      %v420 = vld [vmem:[%s357 + $0xa8] sm:$0xe]
      %v421 = vld [vmem:[%s357 + $0xb4] sm:$0xe]
      %v454 = vunpack.c.l.b16 %v228
      %v455 = vunpack.c.l.b16 %v229
      %v456 = vunpack.c.l.b16 %v230
      %v457 = vunpack.c.l.b16 %v231
      %v458 = vunpack.c.l.b16 %v232
      %v459 = vunpack.c.l.b16 %v233
      %v460 = vunpack.c.l.b16 %v234
      %v461 = vunpack.c.l.b16 %v235
      %v462 = vunpack.c.l.b16 %v236
      %v463 = vunpack.c.l.b16 %v237
      %v464 = vunpack.c.l.b16 %v238
      %v465 = vunpack.c.l.b16 %v239
      %v466 = vunpack.c.l.b16 %v240
      %v467 = vunpack.c.l.b16 %v241
      %v468 = vunpack.c.l.b16 %v242
      %v469 = vunpack.c.l.b16 %v243
      %v470 = vunpack.c.l.b16 %v244
      %v471 = vunpack.c.l.b16 %v245
      %v472 = vunpack.c.l.b16 %v246
      %v473 = vunpack.c.l.b16 %v247
      %v474 = vunpack.c.l.b16 %v248
      %v475 = vunpack.c.l.b16 %v249
      %v476 = vunpack.c.l.b16 %v250
      %v477 = vunpack.c.l.b16 %v251
      %v478 = vunpack.c.l.b16 %v252
      %v479 = vunpack.c.l.b16 %v253
      %v480 = vunpack.c.l.b16 %v254
      %v481 = vunpack.c.l.b16 %v255
      %v482 = vunpack.c.l.b16 %v256
      %v483 = vunpack.c.l.b16 %v257
      %v484 = vunpack.c.l.b16 %v258
      %v485 = vunpack.c.l.b16 %v259
      %v486 = vpack.c.b16 %v455, %v454
      %v487 = vpack.c.b16 %v457, %v456
      %v488 = vpack.c.b16 %v459, %v458
      %v489 = vpack.c.b16 %v461, %v460
      %v490 = vpack.c.b16 %v463, %v462
      %v491 = vpack.c.b16 %v465, %v464
      %v492 = vpack.c.b16 %v467, %v466
      %v493 = vpack.c.b16 %v469, %v468
      %v494 = vpack.c.b16 %v471, %v470
      %v495 = vpack.c.b16 %v473, %v472
      %v496 = vpack.c.b16 %v475, %v474
      %v497 = vpack.c.b16 %v477, %v476
      %v498 = vpack.c.b16 %v479, %v478
      %v499 = vpack.c.b16 %v481, %v480
      %v500 = vpack.c.b16 %v483, %v482
      %v501 = vpack.c.b16 %v485, %v484
      %v518 = vunpack.c.l.b16 %v260
      %v519 = vunpack.c.l.b16 %v261
      %v520 = vunpack.c.l.b16 %v262
      %v521 = vunpack.c.l.b16 %v263
      %v522 = vunpack.c.l.b16 %v264
      %v523 = vunpack.c.l.b16 %v265
      %v524 = vunpack.c.l.b16 %v266
      %v525 = vunpack.c.l.b16 %v267
      %v526 = vunpack.c.l.b16 %v268
      %v527 = vunpack.c.l.b16 %v269
      %v528 = vunpack.c.l.b16 %v270
      %v529 = vunpack.c.l.b16 %v271
      %v530 = vunpack.c.l.b16 %v272
      %v531 = vunpack.c.l.b16 %v273
      %v532 = vunpack.c.l.b16 %v274
      %v533 = vunpack.c.l.b16 %v275
      %v534 = vpack.c.b16 %v518, %v518
      %v535 = vpack.c.b16 %v519, %v519
      %v536 = vpack.c.b16 %v520, %v520
      %v537 = vpack.c.b16 %v521, %v521
      %v538 = vpack.c.b16 %v522, %v522
      %v539 = vpack.c.b16 %v523, %v523
      %v540 = vpack.c.b16 %v524, %v524
      %v541 = vpack.c.b16 %v525, %v525
      %v542 = vpack.c.b16 %v526, %v526
      %v543 = vpack.c.b16 %v527, %v527
      %v544 = vpack.c.b16 %v528, %v528
      %v545 = vpack.c.b16 %v529, %v529
      %v546 = vpack.c.b16 %v530, %v530
      %v547 = vpack.c.b16 %v531, %v531
      %v548 = vpack.c.b16 %v532, %v532
      %v549 = vpack.c.b16 %v533, %v533
      %vm550 = vsmask.f32 7424
      %v552 = vshrl.u32 %v486, 16
      %v554 = vshll.u32 %v486, 16
      %v556 = vrot.slane %v554, 1
      %v557 = vor.u32 %v552, %v556
      %v559 = vshll.u32 %v534, 16
      %v561 = vrot.slane %v559, 1
      %v562 = vsel %vm550, %v557, %v561
      %v564 = vshrl.u32 %v487, 16
      %v566 = vshll.u32 %v487, 16
      %v568 = vrot.slane %v566, 1
      %v569 = vor.u32 %v564, %v568
      %v571 = vshll.u32 %v535, 16
      %v573 = vrot.slane %v571, 1
      %v574 = vsel %vm550, %v569, %v573
      %v576 = vshrl.u32 %v488, 16
      %v578 = vshll.u32 %v488, 16
      %v580 = vrot.slane %v578, 1
      %v581 = vor.u32 %v576, %v580
      %v583 = vshll.u32 %v536, 16
      %v585 = vrot.slane %v583, 1
      %v586 = vsel %vm550, %v581, %v585
      %v588 = vshrl.u32 %v489, 16
      %v590 = vshll.u32 %v489, 16
      %v592 = vrot.slane %v590, 1
      %v593 = vor.u32 %v588, %v592
      %v595 = vshll.u32 %v537, 16
      %v597 = vrot.slane %v595, 1
      %v598 = vsel %vm550, %v593, %v597
      %v600 = vshrl.u32 %v490, 16
      %v602 = vshll.u32 %v490, 16
      %v604 = vrot.slane %v602, 1
      %v605 = vor.u32 %v600, %v604
      %v607 = vshll.u32 %v538, 16
      %v609 = vrot.slane %v607, 1
      %v610 = vsel %vm550, %v605, %v609
      %v612 = vshrl.u32 %v491, 16
      %v614 = vshll.u32 %v491, 16
      %v616 = vrot.slane %v614, 1
      %v617 = vor.u32 %v612, %v616
      %v619 = vshll.u32 %v539, 16
      %v621 = vrot.slane %v619, 1
      %v622 = vsel %vm550, %v617, %v621
      %v624 = vshrl.u32 %v492, 16
      %v626 = vshll.u32 %v492, 16
      %v628 = vrot.slane %v626, 1
      %v629 = vor.u32 %v624, %v628
      %v631 = vshll.u32 %v540, 16
      %v633 = vrot.slane %v631, 1
      %v634 = vsel %vm550, %v629, %v633
      %v636 = vshrl.u32 %v493, 16
      %v638 = vshll.u32 %v493, 16
      %v640 = vrot.slane %v638, 1
      %v641 = vor.u32 %v636, %v640
      %v643 = vshll.u32 %v541, 16
      %v645 = vrot.slane %v643, 1
      %v646 = vsel %vm550, %v641, %v645
      %v648 = vshrl.u32 %v494, 16
      %v650 = vshll.u32 %v494, 16
      %v652 = vrot.slane %v650, 1
      %v653 = vor.u32 %v648, %v652
      %v655 = vshll.u32 %v542, 16
      %v657 = vrot.slane %v655, 1
      %v658 = vsel %vm550, %v653, %v657
      %v660 = vshrl.u32 %v495, 16
      %v662 = vshll.u32 %v495, 16
      %v664 = vrot.slane %v662, 1
      %v665 = vor.u32 %v660, %v664
      %v667 = vshll.u32 %v543, 16
      %v669 = vrot.slane %v667, 1
      %v670 = vsel %vm550, %v665, %v669
      %v672 = vshrl.u32 %v496, 16
      %v674 = vshll.u32 %v496, 16
      %v676 = vrot.slane %v674, 1
      %v677 = vor.u32 %v672, %v676
      %v679 = vshll.u32 %v544, 16
      %v681 = vrot.slane %v679, 1
      %v682 = vsel %vm550, %v677, %v681
      %v684 = vshrl.u32 %v497, 16
      %v686 = vshll.u32 %v497, 16
      %v688 = vrot.slane %v686, 1
      %v689 = vor.u32 %v684, %v688
      %v691 = vshll.u32 %v545, 16
      %v693 = vrot.slane %v691, 1
      %v694 = vsel %vm550, %v689, %v693
      %v696 = vshrl.u32 %v498, 16
      %v698 = vshll.u32 %v498, 16
      %v700 = vrot.slane %v698, 1
      %v701 = vor.u32 %v696, %v700
      %v703 = vshll.u32 %v546, 16
      %v705 = vrot.slane %v703, 1
      %v706 = vsel %vm550, %v701, %v705
      %v708 = vshrl.u32 %v499, 16
      %v710 = vshll.u32 %v499, 16
      %v712 = vrot.slane %v710, 1
      %v713 = vor.u32 %v708, %v712
      %v715 = vshll.u32 %v547, 16
      %v717 = vrot.slane %v715, 1
      %v718 = vsel %vm550, %v713, %v717
      %v720 = vshrl.u32 %v500, 16
      %v722 = vshll.u32 %v500, 16
      %v724 = vrot.slane %v722, 1
      %v725 = vor.u32 %v720, %v724
      %v727 = vshll.u32 %v548, 16
      %v729 = vrot.slane %v727, 1
      %v730 = vsel %vm550, %v725, %v729
      %v732 = vshrl.u32 %v501, 16
      %v734 = vshll.u32 %v501, 16
      %v736 = vrot.slane %v734, 1
      %v737 = vor.u32 %v732, %v736
      %v739 = vshll.u32 %v549, 16
      %v741 = vrot.slane %v739, 1
      %v742 = vsel %vm550, %v737, %v741
      %743 = vrot.lane.b32.xlu0 %v562, 4
      %v744 = vpop.permute.xlu0 %743
      %745 = vrot.lane.b32.xlu0 %v574, 4
      %v746 = vpop.permute.xlu0 %745
      %747 = vrot.lane.b32.xlu0 %v586, 4
      %v748 = vpop.permute.xlu0 %747
      %749 = vrot.lane.b32.xlu0 %v598, 4
      %v750 = vpop.permute.xlu0 %749
      %751 = vrot.lane.b32.xlu0 %v610, 4
      %v752 = vpop.permute.xlu0 %751
      %753 = vrot.lane.b32.xlu0 %v622, 4
      %v754 = vpop.permute.xlu0 %753
      %755 = vrot.lane.b32.xlu0 %v634, 4
      %v756 = vpop.permute.xlu0 %755
      %757 = vrot.lane.b32.xlu0 %v646, 4
      %v758 = vpop.permute.xlu0 %757
      %759 = vrot.lane.b32.xlu0 %v658, 4
      %v760 = vpop.permute.xlu0 %759
      %761 = vrot.lane.b32.xlu0 %v670, 4
      %v762 = vpop.permute.xlu0 %761
      %763 = vrot.lane.b32.xlu0 %v682, 4
      %v764 = vpop.permute.xlu0 %763
      %765 = vrot.lane.b32.xlu0 %v694, 4
      %v766 = vpop.permute.xlu0 %765
      %767 = vrot.lane.b32.xlu0 %v706, 4
      %v768 = vpop.permute.xlu0 %767
      %769 = vrot.lane.b32.xlu0 %v718, 4
      %v770 = vpop.permute.xlu0 %769
      %771 = vrot.lane.b32.xlu0 %v730, 4
      %v772 = vpop.permute.xlu0 %771
      %773 = vrot.lane.b32.xlu0 %v742, 4
      %v774 = vpop.permute.xlu0 %773
      %v791 = vunpack.c.l.b16 %v276
      %v792 = vunpack.c.l.b16 %v277
      %v793 = vunpack.c.l.b16 %v278
      %v794 = vunpack.c.l.b16 %v279
      %v795 = vunpack.c.l.b16 %v280
      %v796 = vunpack.c.l.b16 %v281
      %v797 = vunpack.c.l.b16 %v282
      %v798 = vunpack.c.l.b16 %v283
      %v799 = vunpack.c.l.b16 %v284
      %v800 = vunpack.c.l.b16 %v285
      %v801 = vunpack.c.l.b16 %v286
      %v802 = vunpack.c.l.b16 %v287
      %v803 = vunpack.c.l.b16 %v288
      %v804 = vunpack.c.l.b16 %v289
      %v805 = vunpack.c.l.b16 %v290
      %v806 = vunpack.c.l.b16 %v291
      %v807 = vpack.c.b16 %v455, %v791
      %v808 = vpack.c.b16 %v457, %v792
      %v809 = vpack.c.b16 %v459, %v793
      %v810 = vpack.c.b16 %v461, %v794
      %v811 = vpack.c.b16 %v463, %v795
      %v812 = vpack.c.b16 %v465, %v796
      %v813 = vpack.c.b16 %v467, %v797
      %v814 = vpack.c.b16 %v469, %v798
      %v815 = vpack.c.b16 %v471, %v799
      %v816 = vpack.c.b16 %v473, %v800
      %v817 = vpack.c.b16 %v475, %v801
      %v818 = vpack.c.b16 %v477, %v802
      %v819 = vpack.c.b16 %v479, %v803
      %v820 = vpack.c.b16 %v481, %v804
      %v821 = vpack.c.b16 %v483, %v805
      %v822 = vpack.c.b16 %v485, %v806
      %vm823 = vcmask 1046528
      %v824 = vrot.slane %v807, 1
      %v825 = vrot.slane %v534, 1
      %v826 = vsel %vm823, %v824, %v825
      %v827 = vrot.slane %v808, 1
      %v828 = vrot.slane %v535, 1
      %v829 = vsel %vm823, %v827, %v828
      %v830 = vrot.slane %v809, 1
      %v831 = vrot.slane %v536, 1
      %v832 = vsel %vm823, %v830, %v831
      %v833 = vrot.slane %v810, 1
      %v834 = vrot.slane %v537, 1
      %v835 = vsel %vm823, %v833, %v834
      %v836 = vrot.slane %v811, 1
      %v837 = vrot.slane %v538, 1
      %v838 = vsel %vm823, %v836, %v837
      %v839 = vrot.slane %v812, 1
      %v840 = vrot.slane %v539, 1
      %v841 = vsel %vm823, %v839, %v840
      %v842 = vrot.slane %v813, 1
      %v843 = vrot.slane %v540, 1
      %v844 = vsel %vm823, %v842, %v843
      %v845 = vrot.slane %v814, 1
      %v846 = vrot.slane %v541, 1
      %v847 = vsel %vm823, %v845, %v846
      %v848 = vrot.slane %v815, 1
      %v849 = vrot.slane %v542, 1
      %v850 = vsel %vm823, %v848, %v849
      %v851 = vrot.slane %v816, 1
      %v852 = vrot.slane %v543, 1
      %v853 = vsel %vm823, %v851, %v852
      %v854 = vrot.slane %v817, 1
      %v855 = vrot.slane %v544, 1
      %v856 = vsel %vm823, %v854, %v855
      %v857 = vrot.slane %v818, 1
      %v858 = vrot.slane %v545, 1
      %v859 = vsel %vm823, %v857, %v858
      %v860 = vrot.slane %v819, 1
      %v861 = vrot.slane %v546, 1
      %v862 = vsel %vm823, %v860, %v861
      %v863 = vrot.slane %v820, 1
      %v864 = vrot.slane %v547, 1
      %v865 = vsel %vm823, %v863, %v864
      %v866 = vrot.slane %v821, 1
      %v867 = vrot.slane %v548, 1
      %v868 = vsel %vm823, %v866, %v867
      %v869 = vrot.slane %v822, 1
      %v870 = vrot.slane %v549, 1
      %v871 = vsel %vm823, %v869, %v870
      %872 = vrot.lane.b32.xlu0 %v826, 8
      %v873 = vpop.permute.xlu0 %872
      %874 = vrot.lane.b32.xlu0 %v829, 8
      %v875 = vpop.permute.xlu0 %874
      %876 = vrot.lane.b32.xlu0 %v832, 8
      %v877 = vpop.permute.xlu0 %876
      %878 = vrot.lane.b32.xlu0 %v835, 8
      %v879 = vpop.permute.xlu0 %878
      %880 = vrot.lane.b32.xlu0 %v838, 8
      %v881 = vpop.permute.xlu0 %880
      %882 = vrot.lane.b32.xlu0 %v841, 8
      %v883 = vpop.permute.xlu0 %882
      %884 = vrot.lane.b32.xlu0 %v844, 8
      %v885 = vpop.permute.xlu0 %884
      %886 = vrot.lane.b32.xlu0 %v847, 8
      %v887 = vpop.permute.xlu0 %886
      %888 = vrot.lane.b32.xlu0 %v850, 8
      %v889 = vpop.permute.xlu0 %888
      %890 = vrot.lane.b32.xlu0 %v853, 8
      %v891 = vpop.permute.xlu0 %890
      %892 = vrot.lane.b32.xlu0 %v856, 8
      %v893 = vpop.permute.xlu0 %892
      %894 = vrot.lane.b32.xlu0 %v859, 8
      %v895 = vpop.permute.xlu0 %894
      %896 = vrot.lane.b32.xlu0 %v862, 8
      %v897 = vpop.permute.xlu0 %896
      %898 = vrot.lane.b32.xlu0 %v865, 8
      %v899 = vpop.permute.xlu0 %898
      %900 = vrot.lane.b32.xlu0 %v868, 8
      %v901 = vpop.permute.xlu0 %900
      %902 = vrot.lane.b32.xlu0 %v871, 8
      %v903 = vpop.permute.xlu0 %902
      %v936 = vunpack.c.l.b16 %v293
      %v937 = vunpack.c.l.b16 %v294
      %v938 = vunpack.c.l.b16 %v295
      %v939 = vunpack.c.l.b16 %v296
      %v940 = vunpack.c.l.b16 %v297
      %v941 = vunpack.c.l.b16 %v298
      %v942 = vunpack.c.l.b16 %v299
      %v943 = vunpack.c.l.b16 %v300
      %v944 = vunpack.c.l.b16 %v301
      %v945 = vunpack.c.l.b16 %v302
      %v946 = vunpack.c.l.b16 %v303
      %v947 = vunpack.c.l.b16 %v304
      %v948 = vunpack.c.l.b16 %v305
      %v949 = vunpack.c.l.b16 %v306
      %v950 = vunpack.c.l.b16 %v307
      %v951 = vunpack.c.l.b16 %v308
      %v952 = vunpack.c.l.b16 %v309
      %v953 = vunpack.c.l.b16 %v310
      %v954 = vunpack.c.l.b16 %v311
      %v955 = vunpack.c.l.b16 %v312
      %v956 = vunpack.c.l.b16 %v313
      %v957 = vunpack.c.l.b16 %v314
      %v958 = vunpack.c.l.b16 %v315
      %v959 = vunpack.c.l.b16 %v316
      %v960 = vunpack.c.l.b16 %v317
      %v961 = vunpack.c.l.b16 %v318
      %v962 = vunpack.c.l.b16 %v319
      %v963 = vunpack.c.l.b16 %v320
      %v964 = vunpack.c.l.b16 %v321
      %v965 = vunpack.c.l.b16 %v322
      %v966 = vunpack.c.l.b16 %v323
      %v967 = vunpack.c.l.b16 %v324
      %v968 = vpack.c.b16 %v937, %v936
      %v969 = vpack.c.b16 %v939, %v938
      %v970 = vpack.c.b16 %v941, %v940
      %v971 = vpack.c.b16 %v943, %v942
      %v972 = vpack.c.b16 %v945, %v944
      %v973 = vpack.c.b16 %v947, %v946
      %v974 = vpack.c.b16 %v949, %v948
      %v975 = vpack.c.b16 %v951, %v950
      %v976 = vpack.c.b16 %v953, %v952
      %v977 = vpack.c.b16 %v955, %v954
      %v978 = vpack.c.b16 %v957, %v956
      %v979 = vpack.c.b16 %v959, %v958
      %v980 = vpack.c.b16 %v961, %v960
      %v981 = vpack.c.b16 %v963, %v962
      %v982 = vpack.c.b16 %v965, %v964
      %v983 = vpack.c.b16 %v967, %v966
      %984 = vrot.lane.b32.xlu0 %v968, 12
      %v985 = vpop.permute.xlu0 %984
      %986 = vrot.lane.b32.xlu0 %v969, 12
      %v987 = vpop.permute.xlu0 %986
      %988 = vrot.lane.b32.xlu0 %v970, 12
      %v989 = vpop.permute.xlu0 %988
      %990 = vrot.lane.b32.xlu0 %v971, 12
      %v991 = vpop.permute.xlu0 %990
      %992 = vrot.lane.b32.xlu0 %v972, 12
      %v993 = vpop.permute.xlu0 %992
      %994 = vrot.lane.b32.xlu0 %v973, 12
      %v995 = vpop.permute.xlu0 %994
      %996 = vrot.lane.b32.xlu0 %v974, 12
      %v997 = vpop.permute.xlu0 %996
      %998 = vrot.lane.b32.xlu0 %v975, 12
      %v999 = vpop.permute.xlu0 %998
      %1000 = vrot.lane.b32.xlu0 %v976, 12
      %v1001 = vpop.permute.xlu0 %1000
      %1002 = vrot.lane.b32.xlu0 %v977, 12
      %v1003 = vpop.permute.xlu0 %1002
      %1004 = vrot.lane.b32.xlu0 %v978, 12
      %v1005 = vpop.permute.xlu0 %1004
      %1006 = vrot.lane.b32.xlu0 %v979, 12
      %v1007 = vpop.permute.xlu0 %1006
      %1008 = vrot.lane.b32.xlu0 %v980, 12
      %v1009 = vpop.permute.xlu0 %1008
      %1010 = vrot.lane.b32.xlu0 %v981, 12
      %v1011 = vpop.permute.xlu0 %1010
      %1012 = vrot.lane.b32.xlu0 %v982, 12
      %v1013 = vpop.permute.xlu0 %1012
      %1014 = vrot.lane.b32.xlu0 %v983, 12
      %v1015 = vpop.permute.xlu0 %1014
      %v1032 = vunpack.c.l.b16 %v325
      %v1033 = vunpack.c.l.b16 %v326
      %v1034 = vunpack.c.l.b16 %v327
      %v1035 = vunpack.c.l.b16 %v328
      %v1036 = vunpack.c.l.b16 %v329
      %v1037 = vunpack.c.l.b16 %v330
      %v1038 = vunpack.c.l.b16 %v331
      %v1039 = vunpack.c.l.b16 %v332
      %v1040 = vunpack.c.l.b16 %v333
      %v1041 = vunpack.c.l.b16 %v334
      %v1042 = vunpack.c.l.b16 %v335
      %v1043 = vunpack.c.l.b16 %v336
      %v1044 = vunpack.c.l.b16 %v337
      %v1045 = vunpack.c.l.b16 %v338
      %v1046 = vunpack.c.l.b16 %v339
      %v1047 = vunpack.c.l.b16 %v340
      %v1048 = vpack.c.b16 %v1032, %v1032
      %v1049 = vpack.c.b16 %v1033, %v1033
      %v1050 = vpack.c.b16 %v1034, %v1034
      %v1051 = vpack.c.b16 %v1035, %v1035
      %v1052 = vpack.c.b16 %v1036, %v1036
      %v1053 = vpack.c.b16 %v1037, %v1037
      %v1054 = vpack.c.b16 %v1038, %v1038
      %v1055 = vpack.c.b16 %v1039, %v1039
      %v1056 = vpack.c.b16 %v1040, %v1040
      %v1057 = vpack.c.b16 %v1041, %v1041
      %v1058 = vpack.c.b16 %v1042, %v1042
      %v1059 = vpack.c.b16 %v1043, %v1043
      %v1060 = vpack.c.b16 %v1044, %v1044
      %v1061 = vpack.c.b16 %v1045, %v1045
      %v1062 = vpack.c.b16 %v1046, %v1046
      %v1063 = vpack.c.b16 %v1047, %v1047
      %v1065 = vshrl.u32 %v968, 16
      %v1067 = vshll.u32 %v968, 16
      %v1069 = vrot.slane %v1067, 1
      %v1070 = vor.u32 %v1065, %v1069
      %v1072 = vshll.u32 %v1048, 16
      %v1074 = vrot.slane %v1072, 1
      %v1075 = vsel %vm550, %v1070, %v1074
      %v1077 = vshrl.u32 %v969, 16
      %v1079 = vshll.u32 %v969, 16
      %v1081 = vrot.slane %v1079, 1
      %v1082 = vor.u32 %v1077, %v1081
      %v1084 = vshll.u32 %v1049, 16
      %v1086 = vrot.slane %v1084, 1
      %v1087 = vsel %vm550, %v1082, %v1086
      %v1089 = vshrl.u32 %v970, 16
      %v1091 = vshll.u32 %v970, 16
      %v1093 = vrot.slane %v1091, 1
      %v1094 = vor.u32 %v1089, %v1093
      %v1096 = vshll.u32 %v1050, 16
      %v1098 = vrot.slane %v1096, 1
      %v1099 = vsel %vm550, %v1094, %v1098
      %v1101 = vshrl.u32 %v971, 16
      %v1103 = vshll.u32 %v971, 16
      %v1105 = vrot.slane %v1103, 1
      %v1106 = vor.u32 %v1101, %v1105
      %v1108 = vshll.u32 %v1051, 16
      %v1110 = vrot.slane %v1108, 1
      %v1111 = vsel %vm550, %v1106, %v1110
      %v1113 = vshrl.u32 %v972, 16
      %v1115 = vshll.u32 %v972, 16
      %v1117 = vrot.slane %v1115, 1
      %v1118 = vor.u32 %v1113, %v1117
      %v1120 = vshll.u32 %v1052, 16
      %v1122 = vrot.slane %v1120, 1
      %v1123 = vsel %vm550, %v1118, %v1122
      %v1125 = vshrl.u32 %v973, 16
      %v1127 = vshll.u32 %v973, 16
      %v1129 = vrot.slane %v1127, 1
      %v1130 = vor.u32 %v1125, %v1129
      %v1132 = vshll.u32 %v1053, 16
      %v1134 = vrot.slane %v1132, 1
      %v1135 = vsel %vm550, %v1130, %v1134
      %v1137 = vshrl.u32 %v974, 16
      %v1139 = vshll.u32 %v974, 16
      %v1141 = vrot.slane %v1139, 1
      %v1142 = vor.u32 %v1137, %v1141
      %v1144 = vshll.u32 %v1054, 16
      %v1146 = vrot.slane %v1144, 1
      %v1147 = vsel %vm550, %v1142, %v1146
      %v1149 = vshrl.u32 %v975, 16
      %v1151 = vshll.u32 %v975, 16
      %v1153 = vrot.slane %v1151, 1
      %v1154 = vor.u32 %v1149, %v1153
      %v1156 = vshll.u32 %v1055, 16
      %v1158 = vrot.slane %v1156, 1
      %v1159 = vsel %vm550, %v1154, %v1158
      %v1161 = vshrl.u32 %v976, 16
      %v1163 = vshll.u32 %v976, 16
      %v1165 = vrot.slane %v1163, 1
      %v1166 = vor.u32 %v1161, %v1165
      %v1168 = vshll.u32 %v1056, 16
      %v1170 = vrot.slane %v1168, 1
      %v1171 = vsel %vm550, %v1166, %v1170
      %v1173 = vshrl.u32 %v977, 16
      %v1175 = vshll.u32 %v977, 16
      %v1177 = vrot.slane %v1175, 1
      %v1178 = vor.u32 %v1173, %v1177
      %v1180 = vshll.u32 %v1057, 16
      %v1182 = vrot.slane %v1180, 1
      %v1183 = vsel %vm550, %v1178, %v1182
      %v1185 = vshrl.u32 %v978, 16
      %v1187 = vshll.u32 %v978, 16
      %v1189 = vrot.slane %v1187, 1
      %v1190 = vor.u32 %v1185, %v1189
      %v1192 = vshll.u32 %v1058, 16
      %v1194 = vrot.slane %v1192, 1
      %v1195 = vsel %vm550, %v1190, %v1194
      %v1197 = vshrl.u32 %v979, 16
      %v1199 = vshll.u32 %v979, 16
      %v1201 = vrot.slane %v1199, 1
      %v1202 = vor.u32 %v1197, %v1201
      %v1204 = vshll.u32 %v1059, 16
      %v1206 = vrot.slane %v1204, 1
      %v1207 = vsel %vm550, %v1202, %v1206
      %v1209 = vshrl.u32 %v980, 16
      %v1211 = vshll.u32 %v980, 16
      %v1213 = vrot.slane %v1211, 1
      %v1214 = vor.u32 %v1209, %v1213
      %v1216 = vshll.u32 %v1060, 16
      %v1218 = vrot.slane %v1216, 1
      %v1219 = vsel %vm550, %v1214, %v1218
      %v1221 = vshrl.u32 %v981, 16
      %v1223 = vshll.u32 %v981, 16
      %v1225 = vrot.slane %v1223, 1
      %v1226 = vor.u32 %v1221, %v1225
      %v1228 = vshll.u32 %v1061, 16
      %v1230 = vrot.slane %v1228, 1
      %v1231 = vsel %vm550, %v1226, %v1230
      %v1233 = vshrl.u32 %v982, 16
      %v1235 = vshll.u32 %v982, 16
      %v1237 = vrot.slane %v1235, 1
      %v1238 = vor.u32 %v1233, %v1237
      %v1240 = vshll.u32 %v1062, 16
      %v1242 = vrot.slane %v1240, 1
      %v1243 = vsel %vm550, %v1238, %v1242
      %v1245 = vshrl.u32 %v983, 16
      %v1247 = vshll.u32 %v983, 16
      %v1249 = vrot.slane %v1247, 1
      %v1250 = vor.u32 %v1245, %v1249
      %v1252 = vshll.u32 %v1063, 16
      %v1254 = vrot.slane %v1252, 1
      %v1255 = vsel %vm550, %v1250, %v1254
      %1256 = vrot.lane.b32.xlu0 %v1075, 16
      %v1257 = vpop.permute.xlu0 %1256
      %1258 = vrot.lane.b32.xlu0 %v1087, 16
      %v1259 = vpop.permute.xlu0 %1258
      %1260 = vrot.lane.b32.xlu0 %v1099, 16
      %v1261 = vpop.permute.xlu0 %1260
      %1262 = vrot.lane.b32.xlu0 %v1111, 16
      %v1263 = vpop.permute.xlu0 %1262
      %1264 = vrot.lane.b32.xlu0 %v1123, 16
      %v1265 = vpop.permute.xlu0 %1264
      %1266 = vrot.lane.b32.xlu0 %v1135, 16
      %v1267 = vpop.permute.xlu0 %1266
      %1268 = vrot.lane.b32.xlu0 %v1147, 16
      %v1269 = vpop.permute.xlu0 %1268
      %1270 = vrot.lane.b32.xlu0 %v1159, 16
      %v1271 = vpop.permute.xlu0 %1270
      %1272 = vrot.lane.b32.xlu0 %v1171, 16
      %v1273 = vpop.permute.xlu0 %1272
      %1274 = vrot.lane.b32.xlu0 %v1183, 16
      %v1275 = vpop.permute.xlu0 %1274
      %1276 = vrot.lane.b32.xlu0 %v1195, 16
      %v1277 = vpop.permute.xlu0 %1276
      %1278 = vrot.lane.b32.xlu0 %v1207, 16
      %v1279 = vpop.permute.xlu0 %1278
      %1280 = vrot.lane.b32.xlu0 %v1219, 16
      %v1281 = vpop.permute.xlu0 %1280
      %1282 = vrot.lane.b32.xlu0 %v1231, 16
      %v1283 = vpop.permute.xlu0 %1282
      %1284 = vrot.lane.b32.xlu0 %v1243, 16
      %v1285 = vpop.permute.xlu0 %1284
      %1286 = vrot.lane.b32.xlu0 %v1255, 16
      %v1287 = vpop.permute.xlu0 %1286
      %v1304 = vunpack.c.l.b16 %v341
      %v1305 = vunpack.c.l.b16 %v342
      %v1306 = vunpack.c.l.b16 %v343
      %v1307 = vunpack.c.l.b16 %v344
      %v1308 = vunpack.c.l.b16 %v345
      %v1309 = vunpack.c.l.b16 %v346
      %v1310 = vunpack.c.l.b16 %v347
      %v1311 = vunpack.c.l.b16 %v348
      %v1312 = vunpack.c.l.b16 %v349
      %v1313 = vunpack.c.l.b16 %v350
      %v1314 = vunpack.c.l.b16 %v351
      %v1315 = vunpack.c.l.b16 %v352
      %v1316 = vunpack.c.l.b16 %v353
      %v1317 = vunpack.c.l.b16 %v354
      %v1318 = vunpack.c.l.b16 %v355
      %v1319 = vunpack.c.l.b16 %v356
      %v1320 = vpack.c.b16 %v937, %v1304
      %v1321 = vpack.c.b16 %v939, %v1305
      %v1322 = vpack.c.b16 %v941, %v1306
      %v1323 = vpack.c.b16 %v943, %v1307
      %v1324 = vpack.c.b16 %v945, %v1308
      %v1325 = vpack.c.b16 %v947, %v1309
      %v1326 = vpack.c.b16 %v949, %v1310
      %v1327 = vpack.c.b16 %v951, %v1311
      %v1328 = vpack.c.b16 %v953, %v1312
      %v1329 = vpack.c.b16 %v955, %v1313
      %v1330 = vpack.c.b16 %v957, %v1314
      %v1331 = vpack.c.b16 %v959, %v1315
      %v1332 = vpack.c.b16 %v961, %v1316
      %v1333 = vpack.c.b16 %v963, %v1317
      %v1334 = vpack.c.b16 %v965, %v1318
      %v1335 = vpack.c.b16 %v967, %v1319
      %v1336 = vrot.slane %v1320, 1
      %v1337 = vrot.slane %v1048, 1
      %v1338 = vsel %vm823, %v1336, %v1337
      %v1339 = vrot.slane %v1321, 1
      %v1340 = vrot.slane %v1049, 1
      %v1341 = vsel %vm823, %v1339, %v1340
      %v1342 = vrot.slane %v1322, 1
      %v1343 = vrot.slane %v1050, 1
      %v1344 = vsel %vm823, %v1342, %v1343
      %v1345 = vrot.slane %v1323, 1
      %v1346 = vrot.slane %v1051, 1
      %v1347 = vsel %vm823, %v1345, %v1346
      %v1348 = vrot.slane %v1324, 1
      %v1349 = vrot.slane %v1052, 1
      %v1350 = vsel %vm823, %v1348, %v1349
      %v1351 = vrot.slane %v1325, 1
      %v1352 = vrot.slane %v1053, 1
      %v1353 = vsel %vm823, %v1351, %v1352
      %v1354 = vrot.slane %v1326, 1
      %v1355 = vrot.slane %v1054, 1
      %v1356 = vsel %vm823, %v1354, %v1355
      %v1357 = vrot.slane %v1327, 1
      %v1358 = vrot.slane %v1055, 1
      %v1359 = vsel %vm823, %v1357, %v1358
      %v1360 = vrot.slane %v1328, 1
      %v1361 = vrot.slane %v1056, 1
      %v1362 = vsel %vm823, %v1360, %v1361
      %v1363 = vrot.slane %v1329, 1
      %v1364 = vrot.slane %v1057, 1
      %v1365 = vsel %vm823, %v1363, %v1364
      %v1366 = vrot.slane %v1330, 1
      %v1367 = vrot.slane %v1058, 1
      %v1368 = vsel %vm823, %v1366, %v1367
      %v1369 = vrot.slane %v1331, 1
      %v1370 = vrot.slane %v1059, 1
      %v1371 = vsel %vm823, %v1369, %v1370
      %v1372 = vrot.slane %v1332, 1
      %v1373 = vrot.slane %v1060, 1
      %v1374 = vsel %vm823, %v1372, %v1373
      %v1375 = vrot.slane %v1333, 1
      %v1376 = vrot.slane %v1061, 1
      %v1377 = vsel %vm823, %v1375, %v1376
      %v1378 = vrot.slane %v1334, 1
      %v1379 = vrot.slane %v1062, 1
      %v1380 = vsel %vm823, %v1378, %v1379
      %v1381 = vrot.slane %v1335, 1
      %v1382 = vrot.slane %v1063, 1
      %v1383 = vsel %vm823, %v1381, %v1382
      %1384 = vrot.lane.b32.xlu0 %v1338, 20
      %v1385 = vpop.permute.xlu0 %1384
      %1386 = vrot.lane.b32.xlu0 %v1341, 20
      %v1387 = vpop.permute.xlu0 %1386
      %1388 = vrot.lane.b32.xlu0 %v1344, 20
      %v1389 = vpop.permute.xlu0 %1388
      %1390 = vrot.lane.b32.xlu0 %v1347, 20
      %v1391 = vpop.permute.xlu0 %1390
      %1392 = vrot.lane.b32.xlu0 %v1350, 20
      %v1393 = vpop.permute.xlu0 %1392
      %1394 = vrot.lane.b32.xlu0 %v1353, 20
      %v1395 = vpop.permute.xlu0 %1394
      %1396 = vrot.lane.b32.xlu0 %v1356, 20
      %v1397 = vpop.permute.xlu0 %1396
      %1398 = vrot.lane.b32.xlu0 %v1359, 20
      %v1399 = vpop.permute.xlu0 %1398
      %1400 = vrot.lane.b32.xlu0 %v1362, 20
      %v1401 = vpop.permute.xlu0 %1400
      %1402 = vrot.lane.b32.xlu0 %v1365, 20
      %v1403 = vpop.permute.xlu0 %1402
      %1404 = vrot.lane.b32.xlu0 %v1368, 20
      %v1405 = vpop.permute.xlu0 %1404
      %1406 = vrot.lane.b32.xlu0 %v1371, 20
      %v1407 = vpop.permute.xlu0 %1406
      %1408 = vrot.lane.b32.xlu0 %v1374, 20
      %v1409 = vpop.permute.xlu0 %1408
      %1410 = vrot.lane.b32.xlu0 %v1377, 20
      %v1411 = vpop.permute.xlu0 %1410
      %1412 = vrot.lane.b32.xlu0 %v1380, 20
      %v1413 = vpop.permute.xlu0 %1412
      %1414 = vrot.lane.b32.xlu0 %v1383, 20
      %v1415 = vpop.permute.xlu0 %1414
      %v1448 = vunpack.c.l.b16 %v358
      %v1449 = vunpack.c.l.b16 %v359
      %v1450 = vunpack.c.l.b16 %v360
      %v1451 = vunpack.c.l.b16 %v361
      %v1452 = vunpack.c.l.b16 %v362
      %v1453 = vunpack.c.l.b16 %v363
      %v1454 = vunpack.c.l.b16 %v364
      %v1455 = vunpack.c.l.b16 %v365
      %v1456 = vunpack.c.l.b16 %v366
      %v1457 = vunpack.c.l.b16 %v367
      %v1458 = vunpack.c.l.b16 %v368
      %v1459 = vunpack.c.l.b16 %v369
      %v1460 = vunpack.c.l.b16 %v370
      %v1461 = vunpack.c.l.b16 %v371
      %v1462 = vunpack.c.l.b16 %v372
      %v1463 = vunpack.c.l.b16 %v373
      %v1464 = vunpack.c.l.b16 %v374
      %v1465 = vunpack.c.l.b16 %v375
      %v1466 = vunpack.c.l.b16 %v376
      %v1467 = vunpack.c.l.b16 %v377
      %v1468 = vunpack.c.l.b16 %v378
      %v1469 = vunpack.c.l.b16 %v379
      %v1470 = vunpack.c.l.b16 %v380
      %v1471 = vunpack.c.l.b16 %v381
      %v1472 = vunpack.c.l.b16 %v382
      %v1473 = vunpack.c.l.b16 %v383
      %v1474 = vunpack.c.l.b16 %v384
      %v1475 = vunpack.c.l.b16 %v385
      %v1476 = vunpack.c.l.b16 %v386
      %v1477 = vunpack.c.l.b16 %v387
      %v1478 = vunpack.c.l.b16 %v388
      %v1479 = vunpack.c.l.b16 %v389
      %v1480 = vpack.c.b16 %v1449, %v1448
      %v1481 = vpack.c.b16 %v1451, %v1450
      %v1482 = vpack.c.b16 %v1453, %v1452
      %v1483 = vpack.c.b16 %v1455, %v1454
      %v1484 = vpack.c.b16 %v1457, %v1456
      %v1485 = vpack.c.b16 %v1459, %v1458
      %v1486 = vpack.c.b16 %v1461, %v1460
      %v1487 = vpack.c.b16 %v1463, %v1462
      %v1488 = vpack.c.b16 %v1465, %v1464
      %v1489 = vpack.c.b16 %v1467, %v1466
      %v1490 = vpack.c.b16 %v1469, %v1468
      %v1491 = vpack.c.b16 %v1471, %v1470
      %v1492 = vpack.c.b16 %v1473, %v1472
      %v1493 = vpack.c.b16 %v1475, %v1474
      %v1494 = vpack.c.b16 %v1477, %v1476
      %v1495 = vpack.c.b16 %v1479, %v1478
      %1496 = vrot.lane.b32.xlu0 %v1480, 24
      %v1497 = vpop.permute.xlu0 %1496
      %1498 = vrot.lane.b32.xlu0 %v1481, 24
      %v1499 = vpop.permute.xlu0 %1498
      %1500 = vrot.lane.b32.xlu0 %v1482, 24
      %v1501 = vpop.permute.xlu0 %1500
      %1502 = vrot.lane.b32.xlu0 %v1483, 24
      %v1503 = vpop.permute.xlu0 %1502
      %1504 = vrot.lane.b32.xlu0 %v1484, 24
      %v1505 = vpop.permute.xlu0 %1504
      %1506 = vrot.lane.b32.xlu0 %v1485, 24
      %v1507 = vpop.permute.xlu0 %1506
      %1508 = vrot.lane.b32.xlu0 %v1486, 24
      %v1509 = vpop.permute.xlu0 %1508
      %1510 = vrot.lane.b32.xlu0 %v1487, 24
      %v1511 = vpop.permute.xlu0 %1510
      %1512 = vrot.lane.b32.xlu0 %v1488, 24
      %v1513 = vpop.permute.xlu0 %1512
      %1514 = vrot.lane.b32.xlu0 %v1489, 24
      %v1515 = vpop.permute.xlu0 %1514
      %1516 = vrot.lane.b32.xlu0 %v1490, 24
      %v1517 = vpop.permute.xlu0 %1516
      %1518 = vrot.lane.b32.xlu0 %v1491, 24
      %v1519 = vpop.permute.xlu0 %1518
      %1520 = vrot.lane.b32.xlu0 %v1492, 24
      %v1521 = vpop.permute.xlu0 %1520
      %1522 = vrot.lane.b32.xlu0 %v1493, 24
      %v1523 = vpop.permute.xlu0 %1522
      %1524 = vrot.lane.b32.xlu0 %v1494, 24
      %v1525 = vpop.permute.xlu0 %1524
      %1526 = vrot.lane.b32.xlu0 %v1495, 24
      %v1527 = vpop.permute.xlu0 %1526
      %v1544 = vunpack.c.l.b16 %v390
      %v1545 = vunpack.c.l.b16 %v391
      %v1546 = vunpack.c.l.b16 %v392
      %v1547 = vunpack.c.l.b16 %v393
      %v1548 = vunpack.c.l.b16 %v394
      %v1549 = vunpack.c.l.b16 %v395
      %v1550 = vunpack.c.l.b16 %v396
      %v1551 = vunpack.c.l.b16 %v397
      %v1552 = vunpack.c.l.b16 %v398
      %v1553 = vunpack.c.l.b16 %v399
      %v1554 = vunpack.c.l.b16 %v400
      %v1555 = vunpack.c.l.b16 %v401
      %v1556 = vunpack.c.l.b16 %v402
      %v1557 = vunpack.c.l.b16 %v403
      %v1558 = vunpack.c.l.b16 %v404
      %v1559 = vunpack.c.l.b16 %v405
      %v1560 = vpack.c.b16 %v1544, %v1544
      %v1561 = vpack.c.b16 %v1545, %v1545
      %v1562 = vpack.c.b16 %v1546, %v1546
      %v1563 = vpack.c.b16 %v1547, %v1547
      %v1564 = vpack.c.b16 %v1548, %v1548
      %v1565 = vpack.c.b16 %v1549, %v1549
      %v1566 = vpack.c.b16 %v1550, %v1550
      %v1567 = vpack.c.b16 %v1551, %v1551
      %v1568 = vpack.c.b16 %v1552, %v1552
      %v1569 = vpack.c.b16 %v1553, %v1553
      %v1570 = vpack.c.b16 %v1554, %v1554
      %v1571 = vpack.c.b16 %v1555, %v1555
      %v1572 = vpack.c.b16 %v1556, %v1556
      %v1573 = vpack.c.b16 %v1557, %v1557
      %v1574 = vpack.c.b16 %v1558, %v1558
      %v1575 = vpack.c.b16 %v1559, %v1559
      %v1577 = vshrl.u32 %v1480, 16
      %v1579 = vshll.u32 %v1480, 16
      %v1581 = vrot.slane %v1579, 1
      %v1582 = vor.u32 %v1577, %v1581
      %v1584 = vshll.u32 %v1560, 16
      %v1586 = vrot.slane %v1584, 1
      %v1587 = vsel %vm550, %v1582, %v1586
      %v1589 = vshrl.u32 %v1481, 16
      %v1591 = vshll.u32 %v1481, 16
      %v1593 = vrot.slane %v1591, 1
      %v1594 = vor.u32 %v1589, %v1593
      %v1596 = vshll.u32 %v1561, 16
      %v1598 = vrot.slane %v1596, 1
      %v1599 = vsel %vm550, %v1594, %v1598
      %v1601 = vshrl.u32 %v1482, 16
      %v1603 = vshll.u32 %v1482, 16
      %v1605 = vrot.slane %v1603, 1
      %v1606 = vor.u32 %v1601, %v1605
      %v1608 = vshll.u32 %v1562, 16
      %v1610 = vrot.slane %v1608, 1
      %v1611 = vsel %vm550, %v1606, %v1610
      %v1613 = vshrl.u32 %v1483, 16
      %v1615 = vshll.u32 %v1483, 16
      %v1617 = vrot.slane %v1615, 1
      %v1618 = vor.u32 %v1613, %v1617
      %v1620 = vshll.u32 %v1563, 16
      %v1622 = vrot.slane %v1620, 1
      %v1623 = vsel %vm550, %v1618, %v1622
      %v1625 = vshrl.u32 %v1484, 16
      %v1627 = vshll.u32 %v1484, 16
      %v1629 = vrot.slane %v1627, 1
      %v1630 = vor.u32 %v1625, %v1629
      %v1632 = vshll.u32 %v1564, 16
      %v1634 = vrot.slane %v1632, 1
      %v1635 = vsel %vm550, %v1630, %v1634
      %v1637 = vshrl.u32 %v1485, 16
      %v1639 = vshll.u32 %v1485, 16
      %v1641 = vrot.slane %v1639, 1
      %v1642 = vor.u32 %v1637, %v1641
      %v1644 = vshll.u32 %v1565, 16
      %v1646 = vrot.slane %v1644, 1
      %v1647 = vsel %vm550, %v1642, %v1646
      %v1649 = vshrl.u32 %v1486, 16
      %v1651 = vshll.u32 %v1486, 16
      %v1653 = vrot.slane %v1651, 1
      %v1654 = vor.u32 %v1649, %v1653
      %v1656 = vshll.u32 %v1566, 16
      %v1658 = vrot.slane %v1656, 1
      %v1659 = vsel %vm550, %v1654, %v1658
      %v1661 = vshrl.u32 %v1487, 16
      %v1663 = vshll.u32 %v1487, 16
      %v1665 = vrot.slane %v1663, 1
      %v1666 = vor.u32 %v1661, %v1665
      %v1668 = vshll.u32 %v1567, 16
      %v1670 = vrot.slane %v1668, 1
      %v1671 = vsel %vm550, %v1666, %v1670
      %v1673 = vshrl.u32 %v1488, 16
      %v1675 = vshll.u32 %v1488, 16
      %v1677 = vrot.slane %v1675, 1
      %v1678 = vor.u32 %v1673, %v1677
      %v1680 = vshll.u32 %v1568, 16
      %v1682 = vrot.slane %v1680, 1
      %v1683 = vsel %vm550, %v1678, %v1682
      %v1685 = vshrl.u32 %v1489, 16
      %v1687 = vshll.u32 %v1489, 16
      %v1689 = vrot.slane %v1687, 1
      %v1690 = vor.u32 %v1685, %v1689
      %v1692 = vshll.u32 %v1569, 16
      %v1694 = vrot.slane %v1692, 1
      %v1695 = vsel %vm550, %v1690, %v1694
      %v1697 = vshrl.u32 %v1490, 16
      %v1699 = vshll.u32 %v1490, 16
      %v1701 = vrot.slane %v1699, 1
      %v1702 = vor.u32 %v1697, %v1701
      %v1704 = vshll.u32 %v1570, 16
      %v1706 = vrot.slane %v1704, 1
      %v1707 = vsel %vm550, %v1702, %v1706
      %v1709 = vshrl.u32 %v1491, 16
      %v1711 = vshll.u32 %v1491, 16
      %v1713 = vrot.slane %v1711, 1
      %v1714 = vor.u32 %v1709, %v1713
      %v1716 = vshll.u32 %v1571, 16
      %v1718 = vrot.slane %v1716, 1
      %v1719 = vsel %vm550, %v1714, %v1718
      %v1721 = vshrl.u32 %v1492, 16
      %v1723 = vshll.u32 %v1492, 16
      %v1725 = vrot.slane %v1723, 1
      %v1726 = vor.u32 %v1721, %v1725
      %v1728 = vshll.u32 %v1572, 16
      %v1730 = vrot.slane %v1728, 1
      %v1731 = vsel %vm550, %v1726, %v1730
      %v1733 = vshrl.u32 %v1493, 16
      %v1735 = vshll.u32 %v1493, 16
      %v1737 = vrot.slane %v1735, 1
      %v1738 = vor.u32 %v1733, %v1737
      %v1740 = vshll.u32 %v1573, 16
      %v1742 = vrot.slane %v1740, 1
      %v1743 = vsel %vm550, %v1738, %v1742
      %v1745 = vshrl.u32 %v1494, 16
      %v1747 = vshll.u32 %v1494, 16
      %v1749 = vrot.slane %v1747, 1
      %v1750 = vor.u32 %v1745, %v1749
      %v1752 = vshll.u32 %v1574, 16
      %v1754 = vrot.slane %v1752, 1
      %v1755 = vsel %vm550, %v1750, %v1754
      %v1757 = vshrl.u32 %v1495, 16
      %v1759 = vshll.u32 %v1495, 16
      %v1761 = vrot.slane %v1759, 1
      %v1762 = vor.u32 %v1757, %v1761
      %v1764 = vshll.u32 %v1575, 16
      %v1766 = vrot.slane %v1764, 1
      %v1767 = vsel %vm550, %v1762, %v1766
      %1768 = vrot.lane.b32.xlu0 %v1587, 28
      %v1769 = vpop.permute.xlu0 %1768
      %1770 = vrot.lane.b32.xlu0 %v1599, 28
      %v1771 = vpop.permute.xlu0 %1770
      %1772 = vrot.lane.b32.xlu0 %v1611, 28
      %v1773 = vpop.permute.xlu0 %1772
      %1774 = vrot.lane.b32.xlu0 %v1623, 28
      %v1775 = vpop.permute.xlu0 %1774
      %1776 = vrot.lane.b32.xlu0 %v1635, 28
      %v1777 = vpop.permute.xlu0 %1776
      %1778 = vrot.lane.b32.xlu0 %v1647, 28
      %v1779 = vpop.permute.xlu0 %1778
      %1780 = vrot.lane.b32.xlu0 %v1659, 28
      %v1781 = vpop.permute.xlu0 %1780
      %1782 = vrot.lane.b32.xlu0 %v1671, 28
      %v1783 = vpop.permute.xlu0 %1782
      %1784 = vrot.lane.b32.xlu0 %v1683, 28
      %v1785 = vpop.permute.xlu0 %1784
      %1786 = vrot.lane.b32.xlu0 %v1695, 28
      %v1787 = vpop.permute.xlu0 %1786
      %1788 = vrot.lane.b32.xlu0 %v1707, 28
      %v1789 = vpop.permute.xlu0 %1788
      %1790 = vrot.lane.b32.xlu0 %v1719, 28
      %v1791 = vpop.permute.xlu0 %1790
      %1792 = vrot.lane.b32.xlu0 %v1731, 28
      %v1793 = vpop.permute.xlu0 %1792
      %1794 = vrot.lane.b32.xlu0 %v1743, 28
      %v1795 = vpop.permute.xlu0 %1794
      %1796 = vrot.lane.b32.xlu0 %v1755, 28
      %v1797 = vpop.permute.xlu0 %1796
      %1798 = vrot.lane.b32.xlu0 %v1767, 28
      %v1799 = vpop.permute.xlu0 %1798
      %v1816 = vunpack.c.l.b16 %v406
      %v1817 = vunpack.c.l.b16 %v407
      %v1818 = vunpack.c.l.b16 %v408
      %v1819 = vunpack.c.l.b16 %v409
      %v1820 = vunpack.c.l.b16 %v410
      %v1821 = vunpack.c.l.b16 %v411
      %v1822 = vunpack.c.l.b16 %v412
      %v1823 = vunpack.c.l.b16 %v413
      %v1824 = vunpack.c.l.b16 %v414
      %v1825 = vunpack.c.l.b16 %v415
      %v1826 = vunpack.c.l.b16 %v416
      %v1827 = vunpack.c.l.b16 %v417
      %v1828 = vunpack.c.l.b16 %v418
      %v1829 = vunpack.c.l.b16 %v419
      %v1830 = vunpack.c.l.b16 %v420
      %v1831 = vunpack.c.l.b16 %v421
      %v1832 = vpack.c.b16 %v1449, %v1816
      %v1833 = vpack.c.b16 %v1451, %v1817
      %v1834 = vpack.c.b16 %v1453, %v1818
      %v1835 = vpack.c.b16 %v1455, %v1819
      %v1836 = vpack.c.b16 %v1457, %v1820
      %v1837 = vpack.c.b16 %v1459, %v1821
      %v1838 = vpack.c.b16 %v1461, %v1822
      %v1839 = vpack.c.b16 %v1463, %v1823
      %v1840 = vpack.c.b16 %v1465, %v1824
      %v1841 = vpack.c.b16 %v1467, %v1825
      %v1842 = vpack.c.b16 %v1469, %v1826
      %v1843 = vpack.c.b16 %v1471, %v1827
      %v1844 = vpack.c.b16 %v1473, %v1828
      %v1845 = vpack.c.b16 %v1475, %v1829
      %v1846 = vpack.c.b16 %v1477, %v1830
      %v1847 = vpack.c.b16 %v1479, %v1831
      %v1848 = vrot.slane %v1832, 1
      %v1849 = vrot.slane %v1560, 1
      %v1850 = vsel %vm823, %v1848, %v1849
      %v1851 = vrot.slane %v1833, 1
      %v1852 = vrot.slane %v1561, 1
      %v1853 = vsel %vm823, %v1851, %v1852
      %v1854 = vrot.slane %v1834, 1
      %v1855 = vrot.slane %v1562, 1
      %v1856 = vsel %vm823, %v1854, %v1855
      %v1857 = vrot.slane %v1835, 1
      %v1858 = vrot.slane %v1563, 1
      %v1859 = vsel %vm823, %v1857, %v1858
      %v1860 = vrot.slane %v1836, 1
      %v1861 = vrot.slane %v1564, 1
      %v1862 = vsel %vm823, %v1860, %v1861
      %v1863 = vrot.slane %v1837, 1
      %v1864 = vrot.slane %v1565, 1
      %v1865 = vsel %vm823, %v1863, %v1864
      %v1866 = vrot.slane %v1838, 1
      %v1867 = vrot.slane %v1566, 1
      %v1868 = vsel %vm823, %v1866, %v1867
      %v1869 = vrot.slane %v1839, 1
      %v1870 = vrot.slane %v1567, 1
      %v1871 = vsel %vm823, %v1869, %v1870
      %v1872 = vrot.slane %v1840, 1
      %v1873 = vrot.slane %v1568, 1
      %v1874 = vsel %vm823, %v1872, %v1873
      %v1875 = vrot.slane %v1841, 1
      %v1876 = vrot.slane %v1569, 1
      %v1877 = vsel %vm823, %v1875, %v1876
      %v1878 = vrot.slane %v1842, 1
      %v1879 = vrot.slane %v1570, 1
      %v1880 = vsel %vm823, %v1878, %v1879
      %v1881 = vrot.slane %v1843, 1
      %v1882 = vrot.slane %v1571, 1
      %v1883 = vsel %vm823, %v1881, %v1882
      %v1884 = vrot.slane %v1844, 1
      %v1885 = vrot.slane %v1572, 1
      %v1886 = vsel %vm823, %v1884, %v1885
      %v1887 = vrot.slane %v1845, 1
      %v1888 = vrot.slane %v1573, 1
      %v1889 = vsel %vm823, %v1887, %v1888
      %v1890 = vrot.slane %v1846, 1
      %v1891 = vrot.slane %v1574, 1
      %v1892 = vsel %vm823, %v1890, %v1891
      %v1893 = vrot.slane %v1847, 1
      %v1894 = vrot.slane %v1575, 1
      %v1895 = vsel %vm823, %v1893, %v1894
      %1896 = vrot.lane.b32.xlu0 %v1850, 32
      %v1897 = vpop.permute.xlu0 %1896
      %1898 = vrot.lane.b32.xlu0 %v1853, 32
      %v1899 = vpop.permute.xlu0 %1898
      %1900 = vrot.lane.b32.xlu0 %v1856, 32
      %v1901 = vpop.permute.xlu0 %1900
      %1902 = vrot.lane.b32.xlu0 %v1859, 32
      %v1903 = vpop.permute.xlu0 %1902
      %1904 = vrot.lane.b32.xlu0 %v1862, 32
      %v1905 = vpop.permute.xlu0 %1904
      %1906 = vrot.lane.b32.xlu0 %v1865, 32
      %v1907 = vpop.permute.xlu0 %1906
      %1908 = vrot.lane.b32.xlu0 %v1868, 32
      %v1909 = vpop.permute.xlu0 %1908
      %1910 = vrot.lane.b32.xlu0 %v1871, 32
      %v1911 = vpop.permute.xlu0 %1910
      %1912 = vrot.lane.b32.xlu0 %v1874, 32
      %v1913 = vpop.permute.xlu0 %1912
      %1914 = vrot.lane.b32.xlu0 %v1877, 32
      %v1915 = vpop.permute.xlu0 %1914
      %1916 = vrot.lane.b32.xlu0 %v1880, 32
      %v1917 = vpop.permute.xlu0 %1916
      %1918 = vrot.lane.b32.xlu0 %v1883, 32
      %v1919 = vpop.permute.xlu0 %1918
      %1920 = vrot.lane.b32.xlu0 %v1886, 32
      %v1921 = vpop.permute.xlu0 %1920
      %1922 = vrot.lane.b32.xlu0 %v1889, 32
      %v1923 = vpop.permute.xlu0 %1922
      %1924 = vrot.lane.b32.xlu0 %v1892, 32
      %v1925 = vpop.permute.xlu0 %1924
      %1926 = vrot.lane.b32.xlu0 %v1895, 32
      %v1927 = vpop.permute.xlu0 %1926
      %vm1928 = vcmask 31744
      %v1930 = vsel %vm1928, %v486, %v744
      %v1932 = vsel %vm1928, %v487, %v746
      %v1934 = vsel %vm1928, %v488, %v748
      %v1936 = vsel %vm1928, %v489, %v750
      %v1938 = vsel %vm1928, %v490, %v752
      %v1940 = vsel %vm1928, %v491, %v754
      %v1942 = vsel %vm1928, %v492, %v756
      %v1944 = vsel %vm1928, %v493, %v758
      %v1946 = vsel %vm1928, %v494, %v760
      %v1948 = vsel %vm1928, %v495, %v762
      %v1950 = vsel %vm1928, %v496, %v764
      %v1952 = vsel %vm1928, %v497, %v766
      %v1954 = vsel %vm1928, %v498, %v768
      %v1956 = vsel %vm1928, %v499, %v770
      %v1958 = vsel %vm1928, %v500, %v772
      %v1960 = vsel %vm1928, %v501, %v774
      %vm1961 = vcmask 64512
      %v1963 = vsel %vm1961, %v1930, %v873
      %v1965 = vsel %vm1961, %v1932, %v875
      %v1967 = vsel %vm1961, %v1934, %v877
      %v1969 = vsel %vm1961, %v1936, %v879
      %v1971 = vsel %vm1961, %v1938, %v881
      %v1973 = vsel %vm1961, %v1940, %v883
      %v1975 = vsel %vm1961, %v1942, %v885
      %v1977 = vsel %vm1961, %v1944, %v887
      %v1979 = vsel %vm1961, %v1946, %v889
      %v1981 = vsel %vm1961, %v1948, %v891
      %v1983 = vsel %vm1961, %v1950, %v893
      %v1985 = vsel %vm1961, %v1952, %v895
      %v1987 = vsel %vm1961, %v1954, %v897
      %v1989 = vsel %vm1961, %v1956, %v899
      %v1991 = vsel %vm1961, %v1958, %v901
      %v1993 = vsel %vm1961, %v1960, %v903
      %vm1994 = vcmask 97280
      %v1996 = vsel %vm1994, %v1963, %v985
      %v1998 = vsel %vm1994, %v1965, %v987
      %v2000 = vsel %vm1994, %v1967, %v989
      %v2002 = vsel %vm1994, %v1969, %v991
      %v2004 = vsel %vm1994, %v1971, %v993
      %v2006 = vsel %vm1994, %v1973, %v995
      %v2008 = vsel %vm1994, %v1975, %v997
      %v2010 = vsel %vm1994, %v1977, %v999
      %v2012 = vsel %vm1994, %v1979, %v1001
      %v2014 = vsel %vm1994, %v1981, %v1003
      %v2016 = vsel %vm1994, %v1983, %v1005
      %v2018 = vsel %vm1994, %v1985, %v1007
      %v2020 = vsel %vm1994, %v1987, %v1009
      %v2022 = vsel %vm1994, %v1989, %v1011
      %v2024 = vsel %vm1994, %v1991, %v1013
      %v2026 = vsel %vm1994, %v1993, %v1015
      %vm2027 = vcmask 130048
      %v2029 = vsel %vm2027, %v1996, %v1257
      %v2031 = vsel %vm2027, %v1998, %v1259
      %v2033 = vsel %vm2027, %v2000, %v1261
      %v2035 = vsel %vm2027, %v2002, %v1263
      %v2037 = vsel %vm2027, %v2004, %v1265
      %v2039 = vsel %vm2027, %v2006, %v1267
      %v2041 = vsel %vm2027, %v2008, %v1269
      %v2043 = vsel %vm2027, %v2010, %v1271
      %v2045 = vsel %vm2027, %v2012, %v1273
      %v2047 = vsel %vm2027, %v2014, %v1275
      %v2049 = vsel %vm2027, %v2016, %v1277
      %v2051 = vsel %vm2027, %v2018, %v1279
      %v2053 = vsel %vm2027, %v2020, %v1281
      %v2055 = vsel %vm2027, %v2022, %v1283
      %v2057 = vsel %vm2027, %v2024, %v1285
      %v2059 = vsel %vm2027, %v2026, %v1287
      %vm2060 = vcmask 162816
      %v2062 = vsel %vm2060, %v2029, %v1385
      %v2064 = vsel %vm2060, %v2031, %v1387
      %v2066 = vsel %vm2060, %v2033, %v1389
      %v2068 = vsel %vm2060, %v2035, %v1391
      %v2070 = vsel %vm2060, %v2037, %v1393
      %v2072 = vsel %vm2060, %v2039, %v1395
      %v2074 = vsel %vm2060, %v2041, %v1397
      %v2076 = vsel %vm2060, %v2043, %v1399
      %v2078 = vsel %vm2060, %v2045, %v1401
      %v2080 = vsel %vm2060, %v2047, %v1403
      %v2082 = vsel %vm2060, %v2049, %v1405
      %v2084 = vsel %vm2060, %v2051, %v1407
      %v2086 = vsel %vm2060, %v2053, %v1409
      %v2088 = vsel %vm2060, %v2055, %v1411
      %v2090 = vsel %vm2060, %v2057, %v1413
      %v2092 = vsel %vm2060, %v2059, %v1415
      %vm2093 = vcmask 195584
      %v2095 = vsel %vm2093, %v2062, %v1497
      %v2097 = vsel %vm2093, %v2064, %v1499
      %v2099 = vsel %vm2093, %v2066, %v1501
      %v2101 = vsel %vm2093, %v2068, %v1503
      %v2103 = vsel %vm2093, %v2070, %v1505
      %v2105 = vsel %vm2093, %v2072, %v1507
      %v2107 = vsel %vm2093, %v2074, %v1509
      %v2109 = vsel %vm2093, %v2076, %v1511
      %v2111 = vsel %vm2093, %v2078, %v1513
      %v2113 = vsel %vm2093, %v2080, %v1515
      %v2115 = vsel %vm2093, %v2082, %v1517
      %v2117 = vsel %vm2093, %v2084, %v1519
      %v2119 = vsel %vm2093, %v2086, %v1521
      %v2121 = vsel %vm2093, %v2088, %v1523
      %v2123 = vsel %vm2093, %v2090, %v1525
      %v2125 = vsel %vm2093, %v2092, %v1527
      %vm2126 = vcmask 228352
      %v2128 = vsel %vm2126, %v2095, %v1769
      %v2130 = vsel %vm2126, %v2097, %v1771
      %v2132 = vsel %vm2126, %v2099, %v1773
      %v2134 = vsel %vm2126, %v2101, %v1775
      %v2136 = vsel %vm2126, %v2103, %v1777
      %v2138 = vsel %vm2126, %v2105, %v1779
      %v2140 = vsel %vm2126, %v2107, %v1781
      %v2142 = vsel %vm2126, %v2109, %v1783
      %v2144 = vsel %vm2126, %v2111, %v1785
      %v2146 = vsel %vm2126, %v2113, %v1787
      %v2148 = vsel %vm2126, %v2115, %v1789
      %v2150 = vsel %vm2126, %v2117, %v1791
      %v2152 = vsel %vm2126, %v2119, %v1793
      %v2154 = vsel %vm2126, %v2121, %v1795
      %v2156 = vsel %vm2126, %v2123, %v1797
      %v2158 = vsel %vm2126, %v2125, %v1799
      %vm2159 = vcmask 261120
      %v2161 = vsel %vm2159, %v2128, %v1897
      %v2163 = vsel %vm2159, %v2130, %v1899
      %v2165 = vsel %vm2159, %v2132, %v1901
      %v2167 = vsel %vm2159, %v2134, %v1903
      %v2169 = vsel %vm2159, %v2136, %v1905
      %v2171 = vsel %vm2159, %v2138, %v1907
      %v2173 = vsel %vm2159, %v2140, %v1909
      %v2175 = vsel %vm2159, %v2142, %v1911
      %v2177 = vsel %vm2159, %v2144, %v1913
      %v2179 = vsel %vm2159, %v2146, %v1915
      %v2181 = vsel %vm2159, %v2148, %v1917
      %v2183 = vsel %vm2159, %v2150, %v1919
      %v2185 = vsel %vm2159, %v2152, %v1921
      %v2187 = vsel %vm2159, %v2154, %v1923
      %v2189 = vsel %vm2159, %v2156, %v1925
      %v2191 = vsel %vm2159, %v2158, %v1927
      %v2192 = vld [vmem:[%s211] sm:$0xf]
      %v2193 = vld [vmem:[%s211 + $0x4] sm:$0xf]
      %v2194 = vld [vmem:[%s211 + $0x8] sm:$0xf]
      %v2195 = vld [vmem:[%s211 + $0xc] sm:$0xf]
      %v2196 = vld [vmem:[%s211 + $0x10] sm:$0x3]
      %v2202 = vunpack.c.l.b16 %v2192
      %v2203 = vunpack.c.l.b16 %v2193
      %v2204 = vunpack.c.l.b16 %v2194
      %v2205 = vunpack.c.l.b16 %v2195
      %v2206 = vunpack.c.l.b16 %v2196
      %v2207 = vpack.c.b16 %v2203, %v2202
      %v2208 = vpack.c.b16 %v2205, %v2204
      %v2209 = vpack.c.b16 %v2206, %v2206
      %vm2212 = vcmask 293888
      %v2213 = vsel %vm2212, %v2161, 0
      %v2215 = vsel %vm2212, %v2163, 0
      %v2217 = vsel %vm2212, %v2165, 0
      %v2219 = vsel %vm2212, %v2167, 0
      %v2221 = vsel %vm2212, %v2169, 0
      %v2223 = vsel %vm2212, %v2171, 0
      %v2225 = vsel %vm2212, %v2173, 0
      %v2227 = vsel %vm2212, %v2175, 0
      %v2229 = vsel %vm2212, %v2177, 0
      %v2231 = vsel %vm2212, %v2179, 0
      %v2233 = vsel %vm2212, %v2181, 0
      %v2235 = vsel %vm2212, %v2183, 0
      %v2237 = vsel %vm2212, %v2185, 0
      %v2239 = vsel %vm2212, %v2187, 0
      %v2241 = vsel %vm2212, %v2189, 0
      %v2243 = vsel %vm2212, %v2191, 0
      %vm2245 = vcmask 1041408
      %v2247 = vsel %vm2245, %v2209, 0
      %2249 = vmatprep.subr.bf16.mxu0 0
      %2250 = vmatpush1.bf16.msra.mxu0 %v2207
      %2251 = vmatprep.subr.bf16.mxu0 0
      %2252 = vmatpush1.bf16.msra.mxu0 %v2208
      %2253 = vmatprep.subr.bf16.mxu0 0
      %2254 = vmatpush1.bf16.msra.mxu0 %v2247
      %2255 = vmatprep.subr.bf16.mxu0 0
      %2256 = vmatpush1.bf16.msra.mxu0 0
      %2257 = vmatprep.subr.bf16.mxu0 0
      %2258 = vmatpush1.bf16.msra.mxu0 0
      %2259 = vmatprep.subr.bf16.mxu0 0
      %2260 = vmatpush1.bf16.msra.mxu0 0
      %2261 = vmatprep.subr.bf16.mxu0 0
      %2262 = vmatpush1.bf16.msra.mxu0 0
      %2263 = vmatprep.subr.bf16.mxu0 0
      %2264 = vmatpush1.bf16.msra.mxu0 0
      %2265 = vmatprep.subr.bf16.mxu0 0
      %2266 = vmatpush1.bf16.msra.mxu0 0
      %2267 = vmatprep.subr.bf16.mxu0 0
      %2268 = vmatpush1.bf16.msra.mxu0 0
      %2269 = vmatprep.subr.bf16.mxu0 0
      %2270 = vmatpush1.bf16.msra.mxu0 0
      %2271 = vmatprep.subr.bf16.mxu0 0
      %2272 = vmatpush1.bf16.msra.mxu0 0
      %2273 = vmatprep.subr.bf16.mxu0 0
      %2274 = vmatpush1.bf16.msra.mxu0 0
      %2275 = vmatprep.subr.bf16.mxu0 0
      %2276 = vmatpush1.bf16.msra.mxu0 0
      %2277 = vmatprep.subr.bf16.mxu0 0
      %2278 = vmatpush1.bf16.msra.mxu0 0
      %2279 = vmatprep.subr.bf16.mxu0 0
      %2280 = vmatpush1.bf16.msra.mxu0 0
      %2281 = vmatprep.mubr.bf16.mxu0 0
      %2282 = vmatmul.mubr.bf16.gmra.mrb[0].mxu0 %v2213
      %v2283 = vpop.f32.mrb[0].mxu0
      %v2284 = vadd.f32 0.0, %v2283
      %v2285 = vpop.f32.mrb[0].mxu0
      %v2286 = vpop.f32.mrb[0].mxu0
      %v2287 = vadd.f32 0.0, %v2286
      %v2288 = vpop.f32.mrb[0].mxu0
      %2289 = vmatprep.mubr.bf16.mxu0 0
      %2290 = vmatmul.mubr.bf16.gmra.mrb[0].mxu0 %v2215
      %v2291 = vpop.f32.mrb[0].mxu0
      %v2292 = vadd.f32 0.0, %v2291
      %v2293 = vpop.f32.mrb[0].mxu0
      %v2294 = vpop.f32.mrb[0].mxu0
      %v2295 = vadd.f32 0.0, %v2294
      %v2296 = vpop.f32.mrb[0].mxu0
      %2297 = vmatprep.mubr.bf16.mxu0 0
      %2298 = vmatmul.mubr.bf16.gmra.mrb[0].mxu0 %v2217
      %v2299 = vpop.f32.mrb[0].mxu0
      %v2300 = vadd.f32 0.0, %v2299
      %v2301 = vpop.f32.mrb[0].mxu0
      %v2302 = vpop.f32.mrb[0].mxu0
      %v2303 = vadd.f32 0.0, %v2302
      %v2304 = vpop.f32.mrb[0].mxu0
      %2305 = vmatprep.mubr.bf16.mxu0 0
      %2306 = vmatmul.mubr.bf16.gmra.mrb[0].mxu0 %v2219
      %v2307 = vpop.f32.mrb[0].mxu0
      %v2308 = vadd.f32 0.0, %v2307
      %v2309 = vpop.f32.mrb[0].mxu0
      %v2310 = vpop.f32.mrb[0].mxu0
      %v2311 = vadd.f32 0.0, %v2310
      %v2312 = vpop.f32.mrb[0].mxu0
      %2313 = vmatprep.mubr.bf16.mxu0 0
      %2314 = vmatmul.mubr.bf16.gmra.mrb[0].mxu0 %v2221
      %v2315 = vpop.f32.mrb[0].mxu0
      %v2316 = vadd.f32 0.0, %v2315
      %v2317 = vpop.f32.mrb[0].mxu0
      %v2318 = vpop.f32.mrb[0].mxu0
      %v2319 = vadd.f32 0.0, %v2318
      %v2320 = vpop.f32.mrb[0].mxu0
      %2321 = vmatprep.mubr.bf16.mxu0 0
      %2322 = vmatmul.mubr.bf16.gmra.mrb[0].mxu0 %v2223
      %v2323 = vpop.f32.mrb[0].mxu0
      %v2324 = vadd.f32 0.0, %v2323
      %v2325 = vpop.f32.mrb[0].mxu0
      %v2326 = vpop.f32.mrb[0].mxu0
      %v2327 = vadd.f32 0.0, %v2326
      %v2328 = vpop.f32.mrb[0].mxu0
      %2329 = vmatprep.mubr.bf16.mxu0 0
      %2330 = vmatmul.mubr.bf16.gmra.mrb[0].mxu0 %v2225
      %v2331 = vpop.f32.mrb[0].mxu0
      %v2332 = vadd.f32 0.0, %v2331
      %v2333 = vpop.f32.mrb[0].mxu0
      %v2334 = vpop.f32.mrb[0].mxu0
      %v2335 = vadd.f32 0.0, %v2334
      %v2336 = vpop.f32.mrb[0].mxu0
      %2337 = vmatprep.mubr.bf16.mxu0 0
      %2338 = vmatmul.mubr.bf16.gmra.mrb[0].mxu0 %v2227
      %v2339 = vpop.f32.mrb[0].mxu0
      %v2340 = vadd.f32 0.0, %v2339
      %v2341 = vpop.f32.mrb[0].mxu0
      %v2342 = vpop.f32.mrb[0].mxu0
      %v2343 = vadd.f32 0.0, %v2342
      %v2344 = vpop.f32.mrb[0].mxu0
      %2345 = vmatprep.mubr.bf16.mxu0 0
      %2346 = vmatmul.mubr.bf16.gmra.mrb[0].mxu0 %v2229
      %v2347 = vpop.f32.mrb[0].mxu0
      %v2348 = vadd.f32 0.0, %v2347
      %v2349 = vpop.f32.mrb[0].mxu0
      %v2350 = vpop.f32.mrb[0].mxu0
      %v2351 = vadd.f32 0.0, %v2350
      %v2352 = vpop.f32.mrb[0].mxu0
      %2353 = vmatprep.mubr.bf16.mxu0 0
      %2354 = vmatmul.mubr.bf16.gmra.mrb[0].mxu0 %v2231
      %v2355 = vpop.f32.mrb[0].mxu0
      %v2356 = vadd.f32 0.0, %v2355
      %v2357 = vpop.f32.mrb[0].mxu0
      %v2358 = vpop.f32.mrb[0].mxu0
      %v2359 = vadd.f32 0.0, %v2358
      %v2360 = vpop.f32.mrb[0].mxu0
      %2361 = vmatprep.mubr.bf16.mxu0 0
      %2362 = vmatmul.mubr.bf16.gmra.mrb[0].mxu0 %v2233
      %v2363 = vpop.f32.mrb[0].mxu0
      %v2364 = vadd.f32 0.0, %v2363
      %v2365 = vpop.f32.mrb[0].mxu0
      %v2366 = vpop.f32.mrb[0].mxu0
      %v2367 = vadd.f32 0.0, %v2366
      %v2368 = vpop.f32.mrb[0].mxu0
      %2369 = vmatprep.mubr.bf16.mxu0 0
      %2370 = vmatmul.mubr.bf16.gmra.mrb[0].mxu0 %v2235
      %v2371 = vpop.f32.mrb[0].mxu0
      %v2372 = vadd.f32 0.0, %v2371
      %v2373 = vpop.f32.mrb[0].mxu0
      %v2374 = vpop.f32.mrb[0].mxu0
      %v2375 = vadd.f32 0.0, %v2374
      %v2376 = vpop.f32.mrb[0].mxu0
      %2377 = vmatprep.mubr.bf16.mxu0 0
      %2378 = vmatmul.mubr.bf16.gmra.mrb[0].mxu0 %v2237
      %v2379 = vpop.f32.mrb[0].mxu0
      %v2380 = vadd.f32 0.0, %v2379
      %v2381 = vpop.f32.mrb[0].mxu0
      %v2382 = vpop.f32.mrb[0].mxu0
      %v2383 = vadd.f32 0.0, %v2382
      %v2384 = vpop.f32.mrb[0].mxu0
      %2385 = vmatprep.mubr.bf16.mxu0 0
      %2386 = vmatmul.mubr.bf16.gmra.mrb[0].mxu0 %v2239
      %v2387 = vpop.f32.mrb[0].mxu0
      %v2388 = vadd.f32 0.0, %v2387
      %v2389 = vpop.f32.mrb[0].mxu0
      %v2390 = vpop.f32.mrb[0].mxu0
      %v2391 = vadd.f32 0.0, %v2390
      %v2392 = vpop.f32.mrb[0].mxu0
      %2393 = vmatprep.mubr.bf16.mxu0 0
      %2394 = vmatmul.mubr.bf16.gmra.mrb[0].mxu0 %v2241
      %v2395 = vpop.f32.mrb[0].mxu0
      %v2396 = vadd.f32 0.0, %v2395
      %v2397 = vpop.f32.mrb[0].mxu0
      %v2398 = vpop.f32.mrb[0].mxu0
      %v2399 = vadd.f32 0.0, %v2398
      %v2400 = vpop.f32.mrb[0].mxu0
      %2401 = vmatprep.mubr.bf16.mxu0 0
      %2402 = vmatmul.mubr.bf16.gmra.mrb[0].mxu0 %v2243
      %v2403 = vpop.f32.mrb[0].mxu0
      %v2404 = vadd.f32 0.0, %v2403
      %v2405 = vpop.f32.mrb[0].mxu0
      %v2406 = vpop.f32.mrb[0].mxu0
      %v2407 = vadd.f32 0.0, %v2406
      %v2408 = vpop.f32.mrb[0].mxu0
      %2409 = vdwg.mxu0
      %2410 = vst [vmem:[%s219] sm:$0xff] %v2284
      %2411 = vst [vmem:[%s219 + $0x8] sm:$0xff] %v2287
      %2412 = vst [vmem:[%s219 + $0x10] sm:$0xff] %v2292
      %2413 = vst [vmem:[%s219 + $0x18] sm:$0xff] %v2295
      %2414 = vst [vmem:[%s219 + $0x20] sm:$0xff] %v2300
      %2415 = vst [vmem:[%s219 + $0x28] sm:$0xff] %v2303
      %2416 = vst [vmem:[%s219 + $0x30] sm:$0xff] %v2308
      %2417 = vst [vmem:[%s219 + $0x38] sm:$0xff] %v2311
      %2418 = vst [vmem:[%s219 + $0x40] sm:$0xff] %v2316
      %2419 = vst [vmem:[%s219 + $0x48] sm:$0xff] %v2319
      %2420 = vst [vmem:[%s219 + $0x50] sm:$0xff] %v2324
      %2421 = vst [vmem:[%s219 + $0x58] sm:$0xff] %v2327
      %2422 = vst [vmem:[%s219 + $0x60] sm:$0xff] %v2332
      %2423 = vst [vmem:[%s219 + $0x68] sm:$0xff] %v2335
      %2424 = vst [vmem:[%s219 + $0x70] sm:$0xff] %v2340
      %2425 = vst [vmem:[%s219 + $0x78] sm:$0xff] %v2343
      %2426 = vst [vmem:[%s219 + $0x80] sm:$0xff] %v2348
      %2427 = vst [vmem:[%s219 + $0x88] sm:$0xff] %v2351
      %2428 = vst [vmem:[%s219 + $0x90] sm:$0xff] %v2356
      %2429 = vst [vmem:[%s219 + $0x98] sm:$0xff] %v2359
      %2430 = vst [vmem:[%s219 + $0xa0] sm:$0xff] %v2364
      %2431 = vst [vmem:[%s219 + $0xa8] sm:$0xff] %v2367
      %2432 = vst [vmem:[%s219 + $0xb0] sm:$0xff] %v2372
      %2433 = vst [vmem:[%s219 + $0xb8] sm:$0xff] %v2375
      %2434 = vst [vmem:[%s219 + $0xc0] sm:$0xff] %v2380
      %2435 = vst [vmem:[%s219 + $0xc8] sm:$0xff] %v2383
      %2436 = vst [vmem:[%s219 + $0xd0] sm:$0xff] %v2388
      %2437 = vst [vmem:[%s219 + $0xd8] sm:$0xff] %v2391
      %2438 = vst [vmem:[%s219 + $0xe0] sm:$0xff] %v2396
      %2439 = vst [vmem:[%s219 + $0xe8] sm:$0xff] %v2399
      %2440 = vst [vmem:[%s219 + $0xf0] sm:$0xff] %v2404
      %2441 = vst [vmem:[%s219 + $0xf8] sm:$0xff] %v2407
      %v2442 = vadd.f32 %v2284, %v2287
      %v2443 = vadd.f32 %v2442, %v2292
      %v2444 = vadd.f32 %v2443, %v2295
      %v2445 = vadd.f32 %v2444, %v2300
      %v2446 = vadd.f32 %v2445, %v2303
      %v2447 = vadd.f32 %v2446, %v2308
      %v2448 = vadd.f32 %v2447, %v2311
      %v2449 = vadd.f32 %v2448, %v2316
      %v2450 = vadd.f32 %v2449, %v2319
      %v2451 = vadd.f32 %v2450, %v2324
      %v2452 = vadd.f32 %v2451, %v2327
      %v2453 = vadd.f32 %v2452, %v2332
      %v2454 = vadd.f32 %v2453, %v2335
      %v2455 = vadd.f32 %v2454, %v2340
      %v2456 = vadd.f32 %v2455, %v2343
      %v2457 = vadd.f32 %v2456, %v2348
      %v2458 = vadd.f32 %v2457, %v2351
      %v2459 = vadd.f32 %v2458, %v2356
      %v2460 = vadd.f32 %v2459, %v2359
      %v2461 = vadd.f32 %v2460, %v2364
      %v2462 = vadd.f32 %v2461, %v2367
      %v2463 = vadd.f32 %v2462, %v2372
      %v2464 = vadd.f32 %v2463, %v2375
      %v2465 = vadd.f32 %v2464, %v2380
      %v2466 = vadd.f32 %v2465, %v2383
      %v2467 = vadd.f32 %v2466, %v2388
      %v2468 = vadd.f32 %v2467, %v2391
      %v2469 = vadd.f32 %v2468, %v2396
      %v2470 = vadd.f32 %v2469, %v2399
      %v2471 = vadd.f32 %v2470, %v2404
      %v2472 = vadd.f32 %v2471, %v2407
      %v2473 = vrot.slane %v2472, 4
      %v2474 = vadd.f32 %v2472, %v2473
      %v2475 = vrot.slane %v2474, 2
      %v2476 = vadd.f32 %v2474, %v2475
      %v2477 = vrot.slane %v2476, 1
      %v2478 = vadd.f32 %v2476, %v2477
      %v2479 = vmul.f32 %v2284, %v2284
      %v2480 = vmul.f32 %v2287, %v2287
      %v2481 = vmul.f32 %v2292, %v2292
      %v2482 = vmul.f32 %v2295, %v2295
      %v2483 = vmul.f32 %v2300, %v2300
      %v2484 = vmul.f32 %v2303, %v2303
      %v2485 = vmul.f32 %v2308, %v2308
      %v2486 = vmul.f32 %v2311, %v2311
      %v2487 = vmul.f32 %v2316, %v2316
      %v2488 = vmul.f32 %v2319, %v2319
      %v2489 = vmul.f32 %v2324, %v2324
      %v2490 = vmul.f32 %v2327, %v2327
      %v2491 = vmul.f32 %v2332, %v2332
      %v2492 = vmul.f32 %v2335, %v2335
      %v2493 = vmul.f32 %v2340, %v2340
      %v2494 = vmul.f32 %v2343, %v2343
      %v2495 = vmul.f32 %v2348, %v2348
      %v2496 = vmul.f32 %v2351, %v2351
      %v2497 = vmul.f32 %v2356, %v2356
      %v2498 = vmul.f32 %v2359, %v2359
      %v2499 = vmul.f32 %v2364, %v2364
      %v2500 = vmul.f32 %v2367, %v2367
      %v2501 = vmul.f32 %v2372, %v2372
      %v2502 = vmul.f32 %v2375, %v2375
      %v2503 = vmul.f32 %v2380, %v2380
      %v2504 = vmul.f32 %v2383, %v2383
      %v2505 = vmul.f32 %v2388, %v2388
      %v2506 = vmul.f32 %v2391, %v2391
      %v2507 = vmul.f32 %v2396, %v2396
      %v2508 = vmul.f32 %v2399, %v2399
      %v2509 = vmul.f32 %v2404, %v2404
      %v2510 = vmul.f32 %v2407, %v2407
      %v2511 = vadd.f32 %v2479, %v2480
      %v2512 = vadd.f32 %v2511, %v2481
      %v2513 = vadd.f32 %v2512, %v2482
      %v2514 = vadd.f32 %v2513, %v2483
      %v2515 = vadd.f32 %v2514, %v2484
      %v2516 = vadd.f32 %v2515, %v2485
      %v2517 = vadd.f32 %v2516, %v2486
      %v2518 = vadd.f32 %v2517, %v2487
      %v2519 = vadd.f32 %v2518, %v2488
      %v2520 = vadd.f32 %v2519, %v2489
      %v2521 = vadd.f32 %v2520, %v2490
      %v2522 = vadd.f32 %v2521, %v2491
      %v2523 = vadd.f32 %v2522, %v2492
      %v2524 = vadd.f32 %v2523, %v2493
      %v2525 = vadd.f32 %v2524, %v2494
      %v2526 = vadd.f32 %v2525, %v2495
      %v2527 = vadd.f32 %v2526, %v2496
      %v2528 = vadd.f32 %v2527, %v2497
      %v2529 = vadd.f32 %v2528, %v2498
      %v2530 = vadd.f32 %v2529, %v2499
      %v2531 = vadd.f32 %v2530, %v2500
      %v2532 = vadd.f32 %v2531, %v2501
      %v2533 = vadd.f32 %v2532, %v2502
      %v2534 = vadd.f32 %v2533, %v2503
      %v2535 = vadd.f32 %v2534, %v2504
      %v2536 = vadd.f32 %v2535, %v2505
      %v2537 = vadd.f32 %v2536, %v2506
      %v2538 = vadd.f32 %v2537, %v2507
      %v2539 = vadd.f32 %v2538, %v2508
      %v2540 = vadd.f32 %v2539, %v2509
      %v2541 = vadd.f32 %v2540, %v2510
      %v2542 = vrot.slane %v2541, 4
      %v2543 = vadd.f32 %v2541, %v2542
      %v2544 = vrot.slane %v2543, 2
      %v2545 = vadd.f32 %v2543, %v2544
      %v2546 = vrot.slane %v2545, 1
      %v2547 = vadd.f32 %v2545, %v2546
      %vm2548 = vcmask 1040384
      %v2549 = vsel %vm2548, %v2478, %v2547
      %2550 = vst [vmem:[%s226] sm:$0x3] %v2549
      %p2551 = scmp.lt.s32.totalorder %s19, 1
      %s2552 = scalar_select %p2551, %s19, 1
      %p2553 = scmp.lt.s32.totalorder %s20, 0
      %s2554 = scalar_select %p2553, %s20, 0
      %s2555 = smul.addr %s2552, 32
      %s2556 = sadd.s32 %s2554, %s2555
      %s2557 = smul.addr %s2556, 8
      %s2558 = scalar_lea.vmem %s2, %s2557
      %p2559 = scmp.lt.s32.totalorder %s19, 1
      %s2560 = scalar_select %p2559, %s19, 1
      %p2561 = scmp.lt.s32.totalorder %s20, 0
      %s2562 = scalar_select %p2561, %s20, 0
      %s2563 = sadd.s32 %s2562, %s2560
      %s2564 = smul.addr %s2563, 2
      %s2565 = scalar_lea.vmem %s3, %s2564
      // Predicated region
      $region29: #{conv_block_forward.2} parent=27 // pred_check
        %p2566 = pneg %p99
      $region30: #{conv_block_forward.2} parent=27 // pred_check_branch
        %2568 = sbr.rel (%p2566) target = $region32
      $region31: #{conv_block_forward.2} parent=27 // pred_region
        _
      $region32: #{conv_block_forward.2} parent=27 // pred_fallthru
        _
      // Predicated region
      $region33: #{conv_block_forward.2} parent=27 // pred_check
        %p2569 = pneg %p127
      $region34: #{conv_block_forward.2} parent=27 // pred_check_branch
        %2571 = sbr.rel (%p2569) target = $region36
      $region35: #{conv_block_forward.2} parent=27 // pred_region
        _
      $region36: #{conv_block_forward.2} parent=27 // pred_fallthru
        _
    $region28: #{conv_block_forward.2} parent=5 // pred_fallthru
      _
    %p2572 = scmp.le.s32.totalorder 2, %s10
    // Predicated region
    $region37: #{conv_block_forward.2} parent=5 // pred_check
      %p2573 = pneg %p2572
    $region38: #{conv_block_forward.2} parent=5 // pred_check_branch
      %2575 = sbr.rel (%p2573) target = $region40
    $region39: #{conv_block_forward.2} parent=5 // pred_region
      %s2576 = ssub.s32 %s10, 2
      // Predicated region
      $region41: #{conv_block_forward.2} parent=39 // pred_check
        %p2577 = pneg %p105
      $region42: #{conv_block_forward.2} parent=39 // pred_check_branch
        %2579 = sbr.rel (%p2577) target = $region44
      $region43: #{conv_block_forward.2} parent=39 // pred_region
        %p2580 = scmp.lt.s32.totalorder %s21, 1
        %s2581 = scalar_select %p2580, %s21, 1
        %p2582 = scmp.lt.s32.totalorder %s22, 0
        %s2583 = scalar_select %p2582, %s22, 0
        %s2584 = smul.addr %s2581, 32
        %s2585 = sadd.s32 %s2583, %s2584
        %s2586 = smul.addr %s2585, 8
        %s2587 = scalar_lea.vmem %s2, %s2586
      $region44: #{conv_block_forward.2} parent=39 // pred_fallthru
        _
      // Predicated region
      $region45: #{conv_block_forward.2} parent=39 // pred_check
        %p2588 = pneg %p133
      $region46: #{conv_block_forward.2} parent=39 // pred_check_branch
        %2590 = sbr.rel (%p2588) target = $region48
      $region47: #{conv_block_forward.2} parent=39 // pred_region
        %p2591 = scmp.lt.s32.totalorder %s21, 1
        %s2592 = scalar_select %p2591, %s21, 1
        %p2593 = scmp.lt.s32.totalorder %s22, 0
        %s2594 = scalar_select %p2593, %s22, 0
        %s2595 = sadd.s32 %s2594, %s2592
        %s2596 = smul.addr %s2595, 2
        %s2597 = scalar_lea.vmem %s3, %s2596
      $region48: #{conv_block_forward.2} parent=39 // pred_fallthru
        _
    $region40: #{conv_block_forward.2} parent=5 // pred_fallthru
      _
  $region6: #{conv_block_forward.2} parent=0 // loop_footer
    %s14 = sadd.s32 1, %s10
  $region7: #{conv_block_forward.2} parent=0 // loop_footer_branch
    %9 = sbr.rel target = $region3
  $region8: #{conv_block_forward.2} parent=0 // loop_exit
    _

</llo_original>
